<compile_context>
chip_gen: v5e
topology: v5e:2x2
jax: 0.10.0
libtpu: 0.0.40
codegen_flags: <defaults>
</compile_context>

<pallas_src>
import numpy as np
import jax
import jax.numpy as jnp
from jax.experimental import pallas as pl
from jax.experimental.pallas import tpu as pltpu

# ---------------------------------------------------------------------------
# model sizes (small, consistent with the module's forward)
# ---------------------------------------------------------------------------
EMBEDDING_DIM = 32
HIDDEN_DIM = 32
VOCAB_SIZE = 16
LABELSET_SIZE = 4
SEQ_LEN = 8

# Padded, lane-aligned layout constants.
GP = 128                     # per-gate padded width (one full 128-lane vreg)
SP = 128                     # padded state width: [h_fwd(32) | h_bwd(32) | pad]
NGATES = 4                   # PyTorch gate order: i, f, g, o
GW = NGATES * GP             # 512 gate lanes total
W_OUT_ROWS = SP + 8          # 136: label matrix (128 rows) + bias row, padded


# ---------------------------------------------------------------------------
# Pallas kernel
# ---------------------------------------------------------------------------
def bilstm_kernel(tokf_ref, tokb_ref, g_ref, w_hh_ref, w_out_ref, out_ref):
    """tokf_ref : (1, L*BT, 1) int32  forward token id, row index = l*BT + b
       tokb_ref : (1, L*BT, 1) int32  reversed token id + VOCAB_SIZE
       g_ref    : (2V, 512) f32  [emb@Wih_f^T + b_f ; emb@Wih_b^T + b_b] packed
       w_hh_ref : (128, 512) f32 recurrent weights (fwd rows 0:32, bwd 32:64)
       w_out_ref: (136, 128) f32 packed {W_label^T (padded), b_label}
       out_ref  : (BT, 128)  f32 lane-dense label scores (cols >= LABELSET = 0)
    """
    _, lbt, _ = tokf_ref.shape
    bt = out_ref.shape[0]
    seq = lbt // bt

    # ---- prologue: fused embedding lookup + input projection (one matmul) --
    tok_f = tokf_ref[0]                                    # (L*BT, 1)
    tok_b = tokb_ref[0]                                    # (L*BT, 1), offset +V
    viota = jax.lax.broadcasted_iota(jnp.int32, (lbt, 2 * VOCAB_SIZE), 1)
    onehot = jnp.where((viota == tok_f) | (viota == tok_b),
                       1.0, 0.0).astype(jnp.float32)       # exactly two 1s/row
    # gx[l*BT+b] = emb[s[b,l]]@Wih_f^T + b_f  (fwd cols)
    #            + emb[s[b,L-1-l]]@Wih_b^T + b_b (bwd cols); exact by packing.
    gx = jnp.dot(onehot, g_ref[...],
                 preferred_element_type=jnp.float32)       # (L*BT, 512)

    w_hh = w_hh_ref[...]                                   # (128, 512)
    sig = lambda z: 0.5 * jnp.tanh(0.5 * z) + 0.5          # 1 EUP pass / gate

    def gate(gates, k):                                    # aligned 128-lane block
        return gates[:, k * GP:(k + 1) * GP]

    # ---- fused bidirectional recurrence, statically unrolled ----------------
    # State lanes: [fwd(32) | bwd(32) | pad(64)].  Pad lanes of c/h stay
    # exactly 0: their g-gate pre-activation is 0 so tanh(0)=0, and the 0.5s
    # coming out of the padded i/f/o sigmoids only ever multiply those zeros.
    # t = 0: h = c = 0, so the recurrent matmul and the f-gate are dead.
    gates = gx[0:bt, :]
    c = sig(gate(gates, 0)) * jnp.tanh(gate(gates, 2))
    h = sig(gate(gates, 3)) * jnp.tanh(c)
    # t = 1 .. L-2
    for t in range(1, seq - 1):
        gates = gx[t * bt:(t + 1) * bt, :] + jnp.dot(
            h, w_hh, preferred_element_type=jnp.float32)
        c = sig(gate(gates, 1)) * c + sig(gate(gates, 0)) * jnp.tanh(gate(gates, 2))
        h = sig(gate(gates, 3)) * jnp.tanh(c)
    # t = L-1: o-gate and h are dead (the classifier reads c_n only).
    gates = gx[(seq - 1) * bt:seq * bt, :] + jnp.dot(
        h, w_hh, preferred_element_type=jnp.float32)
    c = sig(gate(gates, 1)) * c + sig(gate(gates, 0)) * jnp.tanh(gate(gates, 2))

    # hidden2label on the final cell states.  torch.cat([c_n[0], c_n[1]]) is
    # free: c is already laid out [c_fwd | c_bwd | 0].  Lane-dense output.
    out_ref[...] = (jnp.dot(c, w_out_ref[0:SP, :],
                            preferred_element_type=jnp.float32)
                    + w_out_ref[SP:SP + 1, :])


# ---------------------------------------------------------------------------
# one-time weight packing (embedding + input projection + biases folded)
# ---------------------------------------------------------------------------
def pack_params(params):
    H, E, V, LAB = HIDDEN_DIM, EMBEDDING_DIM, VOCAB_SIZE, LABELSET_SIZE
    f64 = lambda k: np.asarray(params[k], np.float64)
    emb = f64("embedding")                                  # (V, E)
    wih_f, wih_b = f64("w_ih_f"), f64("w_ih_b")             # (4H, E)
    whh_f, whh_b = f64("w_hh_f"), f64("w_hh_b")             # (4H, H)
    b_f = f64("b_ih_f") + f64("b_hh_f")                     # (4H,)
    b_b = f64("b_ih_b") + f64("b_hh_b")

    g_slab = np.zeros((2 * V, GW), np.float64)              # (32, 512)
    w_hh = np.zeros((SP, GW), np.float64)                   # (128, 512)
    for k in range(NGATES):                                 # gate order i, f, g, o
        c0 = k * GP
        g_slab[0:V,   c0:c0 + H]         = emb @ wih_f[k*H:(k+1)*H, :].T + b_f[k*H:(k+1)*H]
        g_slab[V:2*V, c0 + H:c0 + 2*H]   = emb @ wih_b[k*H:(k+1)*H, :].T + b_b[k*H:(k+1)*H]
        w_hh[0:H,     c0:c0 + H]         = whh_f[k*H:(k+1)*H, :].T
        w_hh[H:2*H,   c0 + H:c0 + 2*H]   = whh_b[k*H:(k+1)*H, :].T

    w_lab, b_lab = f64("w_label"), f64("b_label")
    w_out = np.zeros((W_OUT_ROWS, SP), np.float64)
    w_out[0:H,    :LAB] = w_lab[:, 0:H].T
    w_out[H:2*H,  :LAB] = w_lab[:, H:2*H].T
    w_out[SP, :LAB] = b_lab
    return (jnp.asarray(g_slab, jnp.float32),
            jnp.asarray(w_hh, jnp.float32),
            jnp.asarray(w_out, jnp.float32))


# ---------------------------------------------------------------------------
# forward wrapper (accepts one sentence (L,) or a batch (B, L) of sentences)
# ---------------------------------------------------------------------------
def bilstm_forward(sentences, g_slab, w_hh_slab, w_out_slab, *, batch_tile=None):
    sentences = jnp.asarray(sentences, jnp.int32)
    if sentences.ndim == 1:
        sentences = sentences[None, :]
    B, L = sentences.shape
    assert L >= 2, "kernel unrolling assumes sequence length >= 2"
    if batch_tile is None:
        batch_tile = min(128, -(-B // 8) * 8)
    assert batch_tile % 8 == 0
    BT = batch_tile
    Bp = -(-B // BT) * BT
    if Bp != B:
        sentences = jnp.pad(sentences, ((0, Bp - B), (0, 0)))   # pad token id 0
    num_blocks = Bp // BT

    # Tiny int32 token-index slabs (time-major inside each batch block); the
    # big f32 activations never touch HBM, they are built inside the kernel.
    s3 = sentences.reshape(num_blocks, BT, L)
    tok_f = jnp.transpose(s3, (0, 2, 1)).reshape(num_blocks, L * BT, 1)
    tok_b = (jnp.transpose(s3[:, :, ::-1], (0, 2, 1)).reshape(num_blocks, L * BT, 1)
             + VOCAB_SIZE)

    out = pl.pallas_call(
        bilstm_kernel,
        out_shape=jax.ShapeDtypeStruct((Bp, SP), jnp.float32),
        grid=(num_blocks,),
        in_specs=[
            pl.BlockSpec((1, L * BT, 1), lambda i: (i, 0, 0)),
            pl.BlockSpec((1, L * BT, 1), lambda i: (i, 0, 0)),
            pl.BlockSpec((2 * VOCAB_SIZE, GW), lambda i: (0, 0)),   # VMEM-resident
            pl.BlockSpec((SP, GW), lambda i: (0, 0)),               # VMEM-resident
            pl.BlockSpec((W_OUT_ROWS, SP), lambda i: (0, 0)),       # VMEM-resident
        ],
        out_specs=pl.BlockSpec((BT, SP), lambda i: (i, 0)),
        compiler_params=pltpu.CompilerParams(
            dimension_semantics=("parallel",)),
    )(tok_f, tok_b, g_slab, w_hh_slab, w_out_slab)

    return out[:B, :LABELSET_SIZE]


# ---------------------------------------------------------------------------
# deterministic parameter init (shapes match nn.Embedding / nn.LSTM / nn.Linear)
# ---------------------------------------------------------------------------
def init_params(key):
    ks = jax.random.split(key, 12)
    k_lstm = 1.0 / np.sqrt(HIDDEN_DIM)
    k_lin = 1.0 / np.sqrt(2 * HIDDEN_DIM)
    u = lambda k, shape, bound: jax.random.uniform(
        k, shape, jnp.float32, minval=-bound, maxval=bound)
    return {
        "embedding": jax.random.normal(ks[0], (VOCAB_SIZE, EMBEDDING_DIM), jnp.float32),
        "w_ih_f": u(ks[1], (4 * HIDDEN_DIM, EMBEDDING_DIM), k_lstm),
        "w_hh_f": u(ks[2], (4 * HIDDEN_DIM, HIDDEN_DIM), k_lstm),
        "b_ih_f": u(ks[3], (4 * HIDDEN_DIM,), k_lstm),
        "b_hh_f": u(ks[4], (4 * HIDDEN_DIM,), k_lstm),
        "w_ih_b": u(ks[5], (4 * HIDDEN_DIM, EMBEDDING_DIM), k_lstm),
        "w_hh_b": u(ks[6], (4 * HIDDEN_DIM, HIDDEN_DIM), k_lstm),
        "b_ih_b": u(ks[7], (4 * HIDDEN_DIM,), k_lstm),
        "b_hh_b": u(ks[8], (4 * HIDDEN_DIM,), k_lstm),
        "w_label": u(ks[9], (LABELSET_SIZE, 2 * HIDDEN_DIM), k_lin),
        "b_label": u(ks[10], (LABELSET_SIZE,), k_lin),
    }


# ---------------------------------------------------------------------------
# pure-numpy (float64) reference with PyTorch LSTM semantics
# ---------------------------------------------------------------------------
def reference(sentence, params):
    p = {k: np.asarray(v, np.float64) for k, v in params.items()}
    emb = p["embedding"][np.asarray(sentence)]
    sigmoid = lambda z: 1.0 / (1.0 + np.exp(-z))

    def run_dir(seq, w_ih, w_hh, b_ih, b_hh):
        H = HIDDEN_DIM
        h = np.zeros((1, H)); c = np.zeros((1, H))
        for t in range(seq.shape[0]):
            g = seq[t][None, :] @ w_ih.T + b_ih + h @ w_hh.T + b_hh
            i, f, gg, o = (sigmoid(g[:, :H]), sigmoid(g[:, H:2*H]),
                           np.tanh(g[:, 2*H:3*H]), sigmoid(g[:, 3*H:]))
            c = f * c + i * gg
            h = o * np.tanh(c)
        return c

    c_f = run_dir(emb, p["w_ih_f"], p["w_hh_f"], p["b_ih_f"], p["b_hh_f"])
    c_b = run_dir(emb[::-1], p["w_ih_b"], p["w_hh_b"], p["b_ih_b"], p["b_hh_b"])
    feats = np.concatenate([c_f, c_b], axis=1)
    return feats @ p["w_label"].T + p["b_label"]


if __name__ == "__main__":
    key = jax.random.PRNGKey(0)
    pkey, skey = jax.random.split(key)
    params = init_params(pkey)
    g_slab, w_hh_slab, w_out_slab = pack_params(params)     # one-time packing

    BATCH = 16
    sentences = jax.random.randint(skey, (BATCH, SEQ_LEN), 0, VOCAB_SIZE,
                                   dtype=jnp.int32)

    # Batched path: 2 grid steps of 8 sentences each ("parallel" batch axis).
    out = bilstm_forward(sentences, g_slab, w_hh_slab, w_out_slab, batch_tile=8)
    out = np.asarray(jax.block_until_ready(out))
    ref = np.concatenate([reference(np.asarray(sentences[b]), params)
                          for b in range(BATCH)], axis=0)
    np.testing.assert_allclose(out, ref, rtol=1e-4, atol=1e-4)

    # Single-sentence path (original module semantics: (1, labelset_size)).
    out1 = bilstm_forward(sentences[0], g_slab, w_hh_slab, w_out_slab)
    out1 = np.asarray(jax.block_until_ready(out1))
    np.testing.assert_allclose(out1, ref[0:1], rtol=1e-4, atol=1e-4)

    print("KERNEL_OK")
</pallas_src>

<mosaic_0001>
module attributes {stable_mosaic.version = 11 : i64} {
  func.func @bilstm_kernel(%arg0: i32, %arg1: memref<1x64x1xi32, #tpu.memory_space<vmem>>, %arg2: memref<1x64x1xi32, #tpu.memory_space<vmem>>, %arg3: memref<32x512xf32, #tpu.memory_space<vmem>>, %arg4: memref<128x512xf32, #tpu.memory_space<vmem>>, %arg5: memref<136x128xf32, #tpu.memory_space<vmem>>, %arg6: memref<8x128xf32, #tpu.memory_space<vmem>>) attributes {dimension_semantics = [#tpu.dimension_semantics<parallel>], iteration_bounds = array<i64: 2>, scalar_prefetch = 0 : i64, scratch_operands = 0 : i64, tpu.core_type = #tpu.core_type<tc>, window_params = [{transform_indices = @transform_0, window_bounds = array<i64: 1, 64, 1>}, {transform_indices = @transform_1, window_bounds = array<i64: 1, 64, 1>}, {pipeline_mode = #tpu.pipeline_mode<synchronous>, transform_indices = @transform_2, window_bounds = array<i64: 32, 512>}, {pipeline_mode = #tpu.pipeline_mode<synchronous>, transform_indices = @transform_3, window_bounds = array<i64: 128, 512>}, {pipeline_mode = #tpu.pipeline_mode<synchronous>, transform_indices = @transform_4, window_bounds = array<i64: 136, 128>}, {transform_indices = @transform_5, window_bounds = array<i64: 8, 128>}]} {
    %c0 = arith.constant 0 : index
    %c0_0 = arith.constant 0 : index
    %c0_1 = arith.constant 0 : index
    %0 = vector.load %arg1[%c0, %c0_0, %c0_1] : memref<1x64x1xi32, #tpu.memory_space<vmem>>, vector<1x64x1xi32>
    %1 = vector.shape_cast %0 : vector<1x64x1xi32> to vector<64x1xi32>
    %c0_2 = arith.constant 0 : index
    %c0_3 = arith.constant 0 : index
    %c0_4 = arith.constant 0 : index
    %2 = vector.load %arg2[%c0_2, %c0_3, %c0_4] : memref<1x64x1xi32, #tpu.memory_space<vmem>>, vector<1x64x1xi32>
    %3 = vector.shape_cast %2 : vector<1x64x1xi32> to vector<64x1xi32>
    %4 = tpu.iota {dimensions = array<i32: 1>} : vector<64x32xi32>
    %5 = vector.broadcast %1 : vector<64x1xi32> to vector<64x32xi32>
    %6 = arith.cmpi eq, %4, %5 : vector<64x32xi32>
    %7 = vector.broadcast %3 : vector<64x1xi32> to vector<64x32xi32>
    %8 = arith.cmpi eq, %4, %7 : vector<64x32xi32>
    %9 = arith.ori %6, %8 : vector<64x32xi1>
    %cst = arith.constant 1.000000e+00 : f32
    %cst_5 = arith.constant 0.000000e+00 : f32
    %10 = vector.broadcast %cst : f32 to vector<64x32xf32>
    %11 = vector.broadcast %cst_5 : f32 to vector<64x32xf32>
    %12 = arith.select %9, %10, %11 : vector<64x32xi1>, vector<64x32xf32>
    %c0_6 = arith.constant 0 : index
    %c0_7 = arith.constant 0 : index
    %13 = vector.load %arg3[%c0_6, %c0_7] : memref<32x512xf32, #tpu.memory_space<vmem>>, vector<32x512xf32>
    %cst_8 = arith.constant dense<0.000000e+00> : vector<64x512xf32>
    %14 = tpu.matmul %12, %13, %cst_8 {dimension_numbers = #tpu.dot_dimension_numbers<[1], [0], [0], [1], [0, 0, 1, 1], [], []>} : vector<64x32xf32>, vector<32x512xf32>, vector<64x512xf32> -> vector<64x512xf32>
    %c0_9 = arith.constant 0 : index
    %c0_10 = arith.constant 0 : index
    %15 = vector.load %arg4[%c0_9, %c0_10] : memref<128x512xf32, #tpu.memory_space<vmem>>, vector<128x512xf32>
    %16 = vector.extract_strided_slice %14 {offsets = [0, 0], sizes = [8, 512], strides = [1, 1]} : vector<64x512xf32> to vector<8x512xf32>
    %17 = vector.extract_strided_slice %16 {offsets = [0, 0], sizes = [8, 128], strides = [1, 1]} : vector<8x512xf32> to vector<8x128xf32>
    %cst_11 = arith.constant 5.000000e-01 : f32
    %18 = vector.broadcast %cst_11 : f32 to vector<8x128xf32>
    %19 = arith.mulf %18, %17 : vector<8x128xf32>
    %20 = math.tanh %19 : vector<8x128xf32>
    %cst_12 = arith.constant 5.000000e-01 : f32
    %21 = vector.broadcast %cst_12 : f32 to vector<8x128xf32>
    %22 = arith.mulf %21, %20 : vector<8x128xf32>
    %cst_13 = arith.constant 5.000000e-01 : f32
    %23 = vector.broadcast %cst_13 : f32 to vector<8x128xf32>
    %24 = arith.addf %22, %23 : vector<8x128xf32>
    %25 = vector.extract_strided_slice %16 {offsets = [0, 256], sizes = [8, 128], strides = [1, 1]} : vector<8x512xf32> to vector<8x128xf32>
    %26 = math.tanh %25 : vector<8x128xf32>
    %27 = arith.mulf %24, %26 : vector<8x128xf32>
    %28 = vector.extract_strided_slice %16 {offsets = [0, 384], sizes = [8, 128], strides = [1, 1]} : vector<8x512xf32> to vector<8x128xf32>
    %cst_14 = arith.constant 5.000000e-01 : f32
    %29 = vector.broadcast %cst_14 : f32 to vector<8x128xf32>
    %30 = arith.mulf %29, %28 : vector<8x128xf32>
    %31 = math.tanh %30 : vector<8x128xf32>
    %cst_15 = arith.constant 5.000000e-01 : f32
    %32 = vector.broadcast %cst_15 : f32 to vector<8x128xf32>
    %33 = arith.mulf %32, %31 : vector<8x128xf32>
    %cst_16 = arith.constant 5.000000e-01 : f32
    %34 = vector.broadcast %cst_16 : f32 to vector<8x128xf32>
    %35 = arith.addf %33, %34 : vector<8x128xf32>
    %36 = math.tanh %27 : vector<8x128xf32>
    %37 = arith.mulf %35, %36 : vector<8x128xf32>
    %38 = vector.extract_strided_slice %14 {offsets = [8, 0], sizes = [8, 512], strides = [1, 1]} : vector<64x512xf32> to vector<8x512xf32>
    %cst_17 = arith.constant dense<0.000000e+00> : vector<8x512xf32>
    %39 = tpu.matmul %37, %15, %cst_17 {dimension_numbers = #tpu.dot_dimension_numbers<[1], [0], [0], [1], [0, 0, 1, 1], [], []>} : vector<8x128xf32>, vector<128x512xf32>, vector<8x512xf32> -> vector<8x512xf32>
    %40 = arith.addf %38, %39 : vector<8x512xf32>
    %41 = vector.extract_strided_slice %40 {offsets = [0, 128], sizes = [8, 128], strides = [1, 1]} : vector<8x512xf32> to vector<8x128xf32>
    %cst_18 = arith.constant 5.000000e-01 : f32
    %42 = vector.broadcast %cst_18 : f32 to vector<8x128xf32>
    %43 = arith.mulf %42, %41 : vector<8x128xf32>
    %44 = math.tanh %43 : vector<8x128xf32>
    %cst_19 = arith.constant 5.000000e-01 : f32
    %45 = vector.broadcast %cst_19 : f32 to vector<8x128xf32>
    %46 = arith.mulf %45, %44 : vector<8x128xf32>
    %cst_20 = arith.constant 5.000000e-01 : f32
    %47 = vector.broadcast %cst_20 : f32 to vector<8x128xf32>
    %48 = arith.addf %46, %47 : vector<8x128xf32>
    %49 = arith.mulf %48, %27 : vector<8x128xf32>
    %50 = vector.extract_strided_slice %40 {offsets = [0, 0], sizes = [8, 128], strides = [1, 1]} : vector<8x512xf32> to vector<8x128xf32>
    %cst_21 = arith.constant 5.000000e-01 : f32
    %51 = vector.broadcast %cst_21 : f32 to vector<8x128xf32>
    %52 = arith.mulf %51, %50 : vector<8x128xf32>
    %53 = math.tanh %52 : vector<8x128xf32>
    %cst_22 = arith.constant 5.000000e-01 : f32
    %54 = vector.broadcast %cst_22 : f32 to vector<8x128xf32>
    %55 = arith.mulf %54, %53 : vector<8x128xf32>
    %cst_23 = arith.constant 5.000000e-01 : f32
    %56 = vector.broadcast %cst_23 : f32 to vector<8x128xf32>
    %57 = arith.addf %55, %56 : vector<8x128xf32>
    %58 = vector.extract_strided_slice %40 {offsets = [0, 256], sizes = [8, 128], strides = [1, 1]} : vector<8x512xf32> to vector<8x128xf32>
    %59 = math.tanh %58 : vector<8x128xf32>
    %60 = arith.mulf %57, %59 : vector<8x128xf32>
    %61 = arith.addf %49, %60 : vector<8x128xf32>
    %62 = vector.extract_strided_slice %40 {offsets = [0, 384], sizes = [8, 128], strides = [1, 1]} : vector<8x512xf32> to vector<8x128xf32>
    %cst_24 = arith.constant 5.000000e-01 : f32
    %63 = vector.broadcast %cst_24 : f32 to vector<8x128xf32>
    %64 = arith.mulf %63, %62 : vector<8x128xf32>
    %65 = math.tanh %64 : vector<8x128xf32>
    %cst_25 = arith.constant 5.000000e-01 : f32
    %66 = vector.broadcast %cst_25 : f32 to vector<8x128xf32>
    %67 = arith.mulf %66, %65 : vector<8x128xf32>
    %cst_26 = arith.constant 5.000000e-01 : f32
    %68 = vector.broadcast %cst_26 : f32 to vector<8x128xf32>
    %69 = arith.addf %67, %68 : vector<8x128xf32>
    %70 = math.tanh %61 : vector<8x128xf32>
    %71 = arith.mulf %69, %70 : vector<8x128xf32>
    %72 = vector.extract_strided_slice %14 {offsets = [16, 0], sizes = [8, 512], strides = [1, 1]} : vector<64x512xf32> to vector<8x512xf32>
    %cst_27 = arith.constant dense<0.000000e+00> : vector<8x512xf32>
    %73 = tpu.matmul %71, %15, %cst_27 {dimension_numbers = #tpu.dot_dimension_numbers<[1], [0], [0], [1], [0, 0, 1, 1], [], []>} : vector<8x128xf32>, vector<128x512xf32>, vector<8x512xf32> -> vector<8x512xf32>
    %74 = arith.addf %72, %73 : vector<8x512xf32>
    %75 = vector.extract_strided_slice %74 {offsets = [0, 128], sizes = [8, 128], strides = [1, 1]} : vector<8x512xf32> to vector<8x128xf32>
    %cst_28 = arith.constant 5.000000e-01 : f32
    %76 = vector.broadcast %cst_28 : f32 to vector<8x128xf32>
    %77 = arith.mulf %76, %75 : vector<8x128xf32>
    %78 = math.tanh %77 : vector<8x128xf32>
    %cst_29 = arith.constant 5.000000e-01 : f32
    %79 = vector.broadcast %cst_29 : f32 to vector<8x128xf32>
    %80 = arith.mulf %79, %78 : vector<8x128xf32>
    %cst_30 = arith.constant 5.000000e-01 : f32
    %81 = vector.broadcast %cst_30 : f32 to vector<8x128xf32>
    %82 = arith.addf %80, %81 : vector<8x128xf32>
    %83 = arith.mulf %82, %61 : vector<8x128xf32>
    %84 = vector.extract_strided_slice %74 {offsets = [0, 0], sizes = [8, 128], strides = [1, 1]} : vector<8x512xf32> to vector<8x128xf32>
    %cst_31 = arith.constant 5.000000e-01 : f32
    %85 = vector.broadcast %cst_31 : f32 to vector<8x128xf32>
    %86 = arith.mulf %85, %84 : vector<8x128xf32>
    %87 = math.tanh %86 : vector<8x128xf32>
    %cst_32 = arith.constant 5.000000e-01 : f32
    %88 = vector.broadcast %cst_32 : f32 to vector<8x128xf32>
    %89 = arith.mulf %88, %87 : vector<8x128xf32>
    %cst_33 = arith.constant 5.000000e-01 : f32
    %90 = vector.broadcast %cst_33 : f32 to vector<8x128xf32>
    %91 = arith.addf %89, %90 : vector<8x128xf32>
    %92 = vector.extract_strided_slice %74 {offsets = [0, 256], sizes = [8, 128], strides = [1, 1]} : vector<8x512xf32> to vector<8x128xf32>
    %93 = math.tanh %92 : vector<8x128xf32>
    %94 = arith.mulf %91, %93 : vector<8x128xf32>
    %95 = arith.addf %83, %94 : vector<8x128xf32>
    %96 = vector.extract_strided_slice %74 {offsets = [0, 384], sizes = [8, 128], strides = [1, 1]} : vector<8x512xf32> to vector<8x128xf32>
    %cst_34 = arith.constant 5.000000e-01 : f32
    %97 = vector.broadcast %cst_34 : f32 to vector<8x128xf32>
    %98 = arith.mulf %97, %96 : vector<8x128xf32>
    %99 = math.tanh %98 : vector<8x128xf32>
    %cst_35 = arith.constant 5.000000e-01 : f32
    %100 = vector.broadcast %cst_35 : f32 to vector<8x128xf32>
    %101 = arith.mulf %100, %99 : vector<8x128xf32>
    %cst_36 = arith.constant 5.000000e-01 : f32
    %102 = vector.broadcast %cst_36 : f32 to vector<8x128xf32>
    %103 = arith.addf %101, %102 : vector<8x128xf32>
    %104 = math.tanh %95 : vector<8x128xf32>
    %105 = arith.mulf %103, %104 : vector<8x128xf32>
    %106 = vector.extract_strided_slice %14 {offsets = [24, 0], sizes = [8, 512], strides = [1, 1]} : vector<64x512xf32> to vector<8x512xf32>
    %cst_37 = arith.constant dense<0.000000e+00> : vector<8x512xf32>
    %107 = tpu.matmul %105, %15, %cst_37 {dimension_numbers = #tpu.dot_dimension_numbers<[1], [0], [0], [1], [0, 0, 1, 1], [], []>} : vector<8x128xf32>, vector<128x512xf32>, vector<8x512xf32> -> vector<8x512xf32>
    %108 = arith.addf %106, %107 : vector<8x512xf32>
    %109 = vector.extract_strided_slice %108 {offsets = [0, 128], sizes = [8, 128], strides = [1, 1]} : vector<8x512xf32> to vector<8x128xf32>
    %cst_38 = arith.constant 5.000000e-01 : f32
    %110 = vector.broadcast %cst_38 : f32 to vector<8x128xf32>
    %111 = arith.mulf %110, %109 : vector<8x128xf32>
    %112 = math.tanh %111 : vector<8x128xf32>
    %cst_39 = arith.constant 5.000000e-01 : f32
    %113 = vector.broadcast %cst_39 : f32 to vector<8x128xf32>
    %114 = arith.mulf %113, %112 : vector<8x128xf32>
    %cst_40 = arith.constant 5.000000e-01 : f32
    %115 = vector.broadcast %cst_40 : f32 to vector<8x128xf32>
    %116 = arith.addf %114, %115 : vector<8x128xf32>
    %117 = arith.mulf %116, %95 : vector<8x128xf32>
    %118 = vector.extract_strided_slice %108 {offsets = [0, 0], sizes = [8, 128], strides = [1, 1]} : vector<8x512xf32> to vector<8x128xf32>
    %cst_41 = arith.constant 5.000000e-01 : f32
    %119 = vector.broadcast %cst_41 : f32 to vector<8x128xf32>
    %120 = arith.mulf %119, %118 : vector<8x128xf32>
    %121 = math.tanh %120 : vector<8x128xf32>
    %cst_42 = arith.constant 5.000000e-01 : f32
    %122 = vector.broadcast %cst_42 : f32 to vector<8x128xf32>
    %123 = arith.mulf %122, %121 : vector<8x128xf32>
    %cst_43 = arith.constant 5.000000e-01 : f32
    %124 = vector.broadcast %cst_43 : f32 to vector<8x128xf32>
    %125 = arith.addf %123, %124 : vector<8x128xf32>
    %126 = vector.extract_strided_slice %108 {offsets = [0, 256], sizes = [8, 128], strides = [1, 1]} : vector<8x512xf32> to vector<8x128xf32>
    %127 = math.tanh %126 : vector<8x128xf32>
    %128 = arith.mulf %125, %127 : vector<8x128xf32>
    %129 = arith.addf %117, %128 : vector<8x128xf32>
    %130 = vector.extract_strided_slice %108 {offsets = [0, 384], sizes = [8, 128], strides = [1, 1]} : vector<8x512xf32> to vector<8x128xf32>
    %cst_44 = arith.constant 5.000000e-01 : f32
    %131 = vector.broadcast %cst_44 : f32 to vector<8x128xf32>
    %132 = arith.mulf %131, %130 : vector<8x128xf32>
    %133 = math.tanh %132 : vector<8x128xf32>
    %cst_45 = arith.constant 5.000000e-01 : f32
    %134 = vector.broadcast %cst_45 : f32 to vector<8x128xf32>
    %135 = arith.mulf %134, %133 : vector<8x128xf32>
    %cst_46 = arith.constant 5.000000e-01 : f32
    %136 = vector.broadcast %cst_46 : f32 to vector<8x128xf32>
    %137 = arith.addf %135, %136 : vector<8x128xf32>
    %138 = math.tanh %129 : vector<8x128xf32>
    %139 = arith.mulf %137, %138 : vector<8x128xf32>
    %140 = vector.extract_strided_slice %14 {offsets = [32, 0], sizes = [8, 512], strides = [1, 1]} : vector<64x512xf32> to vector<8x512xf32>
    %cst_47 = arith.constant dense<0.000000e+00> : vector<8x512xf32>
    %141 = tpu.matmul %139, %15, %cst_47 {dimension_numbers = #tpu.dot_dimension_numbers<[1], [0], [0], [1], [0, 0, 1, 1], [], []>} : vector<8x128xf32>, vector<128x512xf32>, vector<8x512xf32> -> vector<8x512xf32>
    %142 = arith.addf %140, %141 : vector<8x512xf32>
    %143 = vector.extract_strided_slice %142 {offsets = [0, 128], sizes = [8, 128], strides = [1, 1]} : vector<8x512xf32> to vector<8x128xf32>
    %cst_48 = arith.constant 5.000000e-01 : f32
    %144 = vector.broadcast %cst_48 : f32 to vector<8x128xf32>
    %145 = arith.mulf %144, %143 : vector<8x128xf32>
    %146 = math.tanh %145 : vector<8x128xf32>
    %cst_49 = arith.constant 5.000000e-01 : f32
    %147 = vector.broadcast %cst_49 : f32 to vector<8x128xf32>
    %148 = arith.mulf %147, %146 : vector<8x128xf32>
    %cst_50 = arith.constant 5.000000e-01 : f32
    %149 = vector.broadcast %cst_50 : f32 to vector<8x128xf32>
    %150 = arith.addf %148, %149 : vector<8x128xf32>
    %151 = arith.mulf %150, %129 : vector<8x128xf32>
    %152 = vector.extract_strided_slice %142 {offsets = [0, 0], sizes = [8, 128], strides = [1, 1]} : vector<8x512xf32> to vector<8x128xf32>
    %cst_51 = arith.constant 5.000000e-01 : f32
    %153 = vector.broadcast %cst_51 : f32 to vector<8x128xf32>
    %154 = arith.mulf %153, %152 : vector<8x128xf32>
    %155 = math.tanh %154 : vector<8x128xf32>
    %cst_52 = arith.constant 5.000000e-01 : f32
    %156 = vector.broadcast %cst_52 : f32 to vector<8x128xf32>
    %157 = arith.mulf %156, %155 : vector<8x128xf32>
    %cst_53 = arith.constant 5.000000e-01 : f32
    %158 = vector.broadcast %cst_53 : f32 to vector<8x128xf32>
    %159 = arith.addf %157, %158 : vector<8x128xf32>
    %160 = vector.extract_strided_slice %142 {offsets = [0, 256], sizes = [8, 128], strides = [1, 1]} : vector<8x512xf32> to vector<8x128xf32>
    %161 = math.tanh %160 : vector<8x128xf32>
    %162 = arith.mulf %159, %161 : vector<8x128xf32>
    %163 = arith.addf %151, %162 : vector<8x128xf32>
    %164 = vector.extract_strided_slice %142 {offsets = [0, 384], sizes = [8, 128], strides = [1, 1]} : vector<8x512xf32> to vector<8x128xf32>
    %cst_54 = arith.constant 5.000000e-01 : f32
    %165 = vector.broadcast %cst_54 : f32 to vector<8x128xf32>
    %166 = arith.mulf %165, %164 : vector<8x128xf32>
    %167 = math.tanh %166 : vector<8x128xf32>
    %cst_55 = arith.constant 5.000000e-01 : f32
    %168 = vector.broadcast %cst_55 : f32 to vector<8x128xf32>
    %169 = arith.mulf %168, %167 : vector<8x128xf32>
    %cst_56 = arith.constant 5.000000e-01 : f32
    %170 = vector.broadcast %cst_56 : f32 to vector<8x128xf32>
    %171 = arith.addf %169, %170 : vector<8x128xf32>
    %172 = math.tanh %163 : vector<8x128xf32>
    %173 = arith.mulf %171, %172 : vector<8x128xf32>
    %174 = vector.extract_strided_slice %14 {offsets = [40, 0], sizes = [8, 512], strides = [1, 1]} : vector<64x512xf32> to vector<8x512xf32>
    %cst_57 = arith.constant dense<0.000000e+00> : vector<8x512xf32>
    %175 = tpu.matmul %173, %15, %cst_57 {dimension_numbers = #tpu.dot_dimension_numbers<[1], [0], [0], [1], [0, 0, 1, 1], [], []>} : vector<8x128xf32>, vector<128x512xf32>, vector<8x512xf32> -> vector<8x512xf32>
    %176 = arith.addf %174, %175 : vector<8x512xf32>
    %177 = vector.extract_strided_slice %176 {offsets = [0, 128], sizes = [8, 128], strides = [1, 1]} : vector<8x512xf32> to vector<8x128xf32>
    %cst_58 = arith.constant 5.000000e-01 : f32
    %178 = vector.broadcast %cst_58 : f32 to vector<8x128xf32>
    %179 = arith.mulf %178, %177 : vector<8x128xf32>
    %180 = math.tanh %179 : vector<8x128xf32>
    %cst_59 = arith.constant 5.000000e-01 : f32
    %181 = vector.broadcast %cst_59 : f32 to vector<8x128xf32>
    %182 = arith.mulf %181, %180 : vector<8x128xf32>
    %cst_60 = arith.constant 5.000000e-01 : f32
    %183 = vector.broadcast %cst_60 : f32 to vector<8x128xf32>
    %184 = arith.addf %182, %183 : vector<8x128xf32>
    %185 = arith.mulf %184, %163 : vector<8x128xf32>
    %186 = vector.extract_strided_slice %176 {offsets = [0, 0], sizes = [8, 128], strides = [1, 1]} : vector<8x512xf32> to vector<8x128xf32>
    %cst_61 = arith.constant 5.000000e-01 : f32
    %187 = vector.broadcast %cst_61 : f32 to vector<8x128xf32>
    %188 = arith.mulf %187, %186 : vector<8x128xf32>
    %189 = math.tanh %188 : vector<8x128xf32>
    %cst_62 = arith.constant 5.000000e-01 : f32
    %190 = vector.broadcast %cst_62 : f32 to vector<8x128xf32>
    %191 = arith.mulf %190, %189 : vector<8x128xf32>
    %cst_63 = arith.constant 5.000000e-01 : f32
    %192 = vector.broadcast %cst_63 : f32 to vector<8x128xf32>
    %193 = arith.addf %191, %192 : vector<8x128xf32>
    %194 = vector.extract_strided_slice %176 {offsets = [0, 256], sizes = [8, 128], strides = [1, 1]} : vector<8x512xf32> to vector<8x128xf32>
    %195 = math.tanh %194 : vector<8x128xf32>
    %196 = arith.mulf %193, %195 : vector<8x128xf32>
    %197 = arith.addf %185, %196 : vector<8x128xf32>
    %198 = vector.extract_strided_slice %176 {offsets = [0, 384], sizes = [8, 128], strides = [1, 1]} : vector<8x512xf32> to vector<8x128xf32>
    %cst_64 = arith.constant 5.000000e-01 : f32
    %199 = vector.broadcast %cst_64 : f32 to vector<8x128xf32>
    %200 = arith.mulf %199, %198 : vector<8x128xf32>
    %201 = math.tanh %200 : vector<8x128xf32>
    %cst_65 = arith.constant 5.000000e-01 : f32
    %202 = vector.broadcast %cst_65 : f32 to vector<8x128xf32>
    %203 = arith.mulf %202, %201 : vector<8x128xf32>
    %cst_66 = arith.constant 5.000000e-01 : f32
    %204 = vector.broadcast %cst_66 : f32 to vector<8x128xf32>
    %205 = arith.addf %203, %204 : vector<8x128xf32>
    %206 = math.tanh %197 : vector<8x128xf32>
    %207 = arith.mulf %205, %206 : vector<8x128xf32>
    %208 = vector.extract_strided_slice %14 {offsets = [48, 0], sizes = [8, 512], strides = [1, 1]} : vector<64x512xf32> to vector<8x512xf32>
    %cst_67 = arith.constant dense<0.000000e+00> : vector<8x512xf32>
    %209 = tpu.matmul %207, %15, %cst_67 {dimension_numbers = #tpu.dot_dimension_numbers<[1], [0], [0], [1], [0, 0, 1, 1], [], []>} : vector<8x128xf32>, vector<128x512xf32>, vector<8x512xf32> -> vector<8x512xf32>
    %210 = arith.addf %208, %209 : vector<8x512xf32>
    %211 = vector.extract_strided_slice %210 {offsets = [0, 128], sizes = [8, 128], strides = [1, 1]} : vector<8x512xf32> to vector<8x128xf32>
    %cst_68 = arith.constant 5.000000e-01 : f32
    %212 = vector.broadcast %cst_68 : f32 to vector<8x128xf32>
    %213 = arith.mulf %212, %211 : vector<8x128xf32>
    %214 = math.tanh %213 : vector<8x128xf32>
    %cst_69 = arith.constant 5.000000e-01 : f32
    %215 = vector.broadcast %cst_69 : f32 to vector<8x128xf32>
    %216 = arith.mulf %215, %214 : vector<8x128xf32>
    %cst_70 = arith.constant 5.000000e-01 : f32
    %217 = vector.broadcast %cst_70 : f32 to vector<8x128xf32>
    %218 = arith.addf %216, %217 : vector<8x128xf32>
    %219 = arith.mulf %218, %197 : vector<8x128xf32>
    %220 = vector.extract_strided_slice %210 {offsets = [0, 0], sizes = [8, 128], strides = [1, 1]} : vector<8x512xf32> to vector<8x128xf32>
    %cst_71 = arith.constant 5.000000e-01 : f32
    %221 = vector.broadcast %cst_71 : f32 to vector<8x128xf32>
    %222 = arith.mulf %221, %220 : vector<8x128xf32>
    %223 = math.tanh %222 : vector<8x128xf32>
    %cst_72 = arith.constant 5.000000e-01 : f32
    %224 = vector.broadcast %cst_72 : f32 to vector<8x128xf32>
    %225 = arith.mulf %224, %223 : vector<8x128xf32>
    %cst_73 = arith.constant 5.000000e-01 : f32
    %226 = vector.broadcast %cst_73 : f32 to vector<8x128xf32>
    %227 = arith.addf %225, %226 : vector<8x128xf32>
    %228 = vector.extract_strided_slice %210 {offsets = [0, 256], sizes = [8, 128], strides = [1, 1]} : vector<8x512xf32> to vector<8x128xf32>
    %229 = math.tanh %228 : vector<8x128xf32>
    %230 = arith.mulf %227, %229 : vector<8x128xf32>
    %231 = arith.addf %219, %230 : vector<8x128xf32>
    %232 = vector.extract_strided_slice %210 {offsets = [0, 384], sizes = [8, 128], strides = [1, 1]} : vector<8x512xf32> to vector<8x128xf32>
    %cst_74 = arith.constant 5.000000e-01 : f32
    %233 = vector.broadcast %cst_74 : f32 to vector<8x128xf32>
    %234 = arith.mulf %233, %232 : vector<8x128xf32>
    %235 = math.tanh %234 : vector<8x128xf32>
    %cst_75 = arith.constant 5.000000e-01 : f32
    %236 = vector.broadcast %cst_75 : f32 to vector<8x128xf32>
    %237 = arith.mulf %236, %235 : vector<8x128xf32>
    %cst_76 = arith.constant 5.000000e-01 : f32
    %238 = vector.broadcast %cst_76 : f32 to vector<8x128xf32>
    %239 = arith.addf %237, %238 : vector<8x128xf32>
    %240 = math.tanh %231 : vector<8x128xf32>
    %241 = arith.mulf %239, %240 : vector<8x128xf32>
    %242 = vector.extract_strided_slice %14 {offsets = [56, 0], sizes = [8, 512], strides = [1, 1]} : vector<64x512xf32> to vector<8x512xf32>
    %cst_77 = arith.constant dense<0.000000e+00> : vector<8x512xf32>
    %243 = tpu.matmul %241, %15, %cst_77 {dimension_numbers = #tpu.dot_dimension_numbers<[1], [0], [0], [1], [0, 0, 1, 1], [], []>} : vector<8x128xf32>, vector<128x512xf32>, vector<8x512xf32> -> vector<8x512xf32>
    %244 = arith.addf %242, %243 : vector<8x512xf32>
    %245 = vector.extract_strided_slice %244 {offsets = [0, 128], sizes = [8, 128], strides = [1, 1]} : vector<8x512xf32> to vector<8x128xf32>
    %cst_78 = arith.constant 5.000000e-01 : f32
    %246 = vector.broadcast %cst_78 : f32 to vector<8x128xf32>
    %247 = arith.mulf %246, %245 : vector<8x128xf32>
    %248 = math.tanh %247 : vector<8x128xf32>
    %cst_79 = arith.constant 5.000000e-01 : f32
    %249 = vector.broadcast %cst_79 : f32 to vector<8x128xf32>
    %250 = arith.mulf %249, %248 : vector<8x128xf32>
    %cst_80 = arith.constant 5.000000e-01 : f32
    %251 = vector.broadcast %cst_80 : f32 to vector<8x128xf32>
    %252 = arith.addf %250, %251 : vector<8x128xf32>
    %253 = arith.mulf %252, %231 : vector<8x128xf32>
    %254 = vector.extract_strided_slice %244 {offsets = [0, 0], sizes = [8, 128], strides = [1, 1]} : vector<8x512xf32> to vector<8x128xf32>
    %cst_81 = arith.constant 5.000000e-01 : f32
    %255 = vector.broadcast %cst_81 : f32 to vector<8x128xf32>
    %256 = arith.mulf %255, %254 : vector<8x128xf32>
    %257 = math.tanh %256 : vector<8x128xf32>
    %cst_82 = arith.constant 5.000000e-01 : f32
    %258 = vector.broadcast %cst_82 : f32 to vector<8x128xf32>
    %259 = arith.mulf %258, %257 : vector<8x128xf32>
    %cst_83 = arith.constant 5.000000e-01 : f32
    %260 = vector.broadcast %cst_83 : f32 to vector<8x128xf32>
    %261 = arith.addf %259, %260 : vector<8x128xf32>
    %262 = vector.extract_strided_slice %244 {offsets = [0, 256], sizes = [8, 128], strides = [1, 1]} : vector<8x512xf32> to vector<8x128xf32>
    %263 = math.tanh %262 : vector<8x128xf32>
    %264 = arith.mulf %261, %263 : vector<8x128xf32>
    %265 = arith.addf %253, %264 : vector<8x128xf32>
    %c0_84 = arith.constant 0 : index
    %c0_85 = arith.constant 0 : index
    %266 = vector.load %arg5[%c0_84, %c0_85] : memref<136x128xf32, #tpu.memory_space<vmem>>, vector<128x128xf32>
    %cst_86 = arith.constant dense<0.000000e+00> : vector<8x128xf32>
    %267 = tpu.matmul %265, %266, %cst_86 {dimension_numbers = #tpu.dot_dimension_numbers<[1], [0], [0], [1], [0, 0, 1, 1], [], []>} : vector<8x128xf32>, vector<128x128xf32>, vector<8x128xf32> -> vector<8x128xf32>
    %c128 = arith.constant 128 : index
    %c0_87 = arith.constant 0 : index
    %268 = vector.load %arg5[%c128, %c0_87] : memref<136x128xf32, #tpu.memory_space<vmem>>, vector<1x128xf32>
    %269 = vector.broadcast %268 : vector<1x128xf32> to vector<8x128xf32>
    %270 = arith.addf %267, %269 : vector<8x128xf32>
    %c0_88 = arith.constant 0 : index
    %c0_89 = arith.constant 0 : index
    %271 = vector.load %arg6[%c0_88, %c0_89] : memref<8x128xf32, #tpu.memory_space<vmem>>, vector<8x128xf32>
    tpu.vector_store %arg6[%c0_88, %c0_89], %270 {strides = array<i32>} : memref<8x128xf32, #tpu.memory_space<vmem>>, vector<8x128xf32>,
    return
  }
  func.func @transform_0(%arg0: i32) -> (i32, i32, i32) {
    %c0_i32 = arith.constant 0 : i32
    %c0_i32_0 = arith.constant 0 : i32
    %c0_i32_1 = arith.constant 0 : i32
    return %arg0, %c0_i32, %c0_i32_0 : i32, i32, i32
  }
  func.func @transform_1(%arg0: i32) -> (i32, i32, i32) {
    %c0_i32 = arith.constant 0 : i32
    %c0_i32_0 = arith.constant 0 : i32
    %c0_i32_1 = arith.constant 0 : i32
    return %arg0, %c0_i32, %c0_i32_0 : i32, i32, i32
  }
  func.func @transform_2(%arg0: i32) -> (i32, i32) {
    %c0_i32 = arith.constant 0 : i32
    %c0_i32_0 = arith.constant 0 : i32
    %c0_i32_1 = arith.constant 0 : i32
    return %c0_i32, %c0_i32_0 : i32, i32
  }
  func.func @transform_3(%arg0: i32) -> (i32, i32) {
    %c0_i32 = arith.constant 0 : i32
    %c0_i32_0 = arith.constant 0 : i32
    %c0_i32_1 = arith.constant 0 : i32
    return %c0_i32, %c0_i32_0 : i32, i32
  }
  func.func @transform_4(%arg0: i32) -> (i32, i32) {
    %c0_i32 = arith.constant 0 : i32
    %c0_i32_0 = arith.constant 0 : i32
    %c0_i32_1 = arith.constant 0 : i32
    return %c0_i32, %c0_i32_0 : i32, i32
  }
  func.func @transform_5(%arg0: i32) -> (i32, i32) {
    %c0_i32 = arith.constant 0 : i32
    %c0_i32_0 = arith.constant 0 : i32
    return %arg0, %c0_i32 : i32, i32
  }
}

</mosaic_0001>

<llo_original>
// kernel: tpu_custom_call.1
$region0: #{tpu_custom_call.1}
  #allocation0 [shape = 'u32[]', space=smem, size = 0x4, offset = 0x4, fixed_abs, tag = 'smem constant byte address 0x4 - core index']
  #allocation1 [shape = 'u32[72,128]{1,0:T(1,128)}', space=vmem, size = 0x9000, scoped, tag = 'internal scratch']
  %s0 = inlined_call_operand.vmem [shape: s32[2,64,1], index: 0, kind: input, shape index: {}]
  %s1 = inlined_call_operand.vmem [shape: s32[2,64,1], index: 1, kind: input, shape index: {}]
  %s2 = inlined_call_operand.hbm [shape: f32[32,512], index: 2, kind: input, shape index: {}]
  %s3 = inlined_call_operand.hbm [shape: f32[128,512], index: 3, kind: input, shape index: {}]
  %s4 = inlined_call_operand.vmem [shape: f32[136,128], index: 4, kind: input, shape index: {}]
  %s5 = inlined_call_operand.hbm [shape: f32[16,128], index: 5, kind: output, shape index: {}]
  %s6 = sld [smem:[#allocation0]]
  $region61: #{tpu_custom_call.1} parent=0
    _
  %s8 = ssub.s32 1, %s6
  %s9 = scalar_select 0, %s8, %s6
  $region1: #{tpu_custom_call.1} parent=0
    #allocation2 [shape = 'u8[65536]{0}', space=vmem, size = 0x10000, scoped, tag = 'input window, operand 2, single buffered']
    #allocation3 [shape = 's32[2]{0}', space=sflag, size = 0x8, scoped, tag = 'scoped memory for tpu_custom_call.1']
    #allocation4 [shape = 's32[2]{0}', space=sflag, size = 0x8, scoped, tag = 'scoped memory for tpu_custom_call.1']
    #allocation5 [shape = 'u8[262144]{0}', space=vmem, size = 0x40000, scoped, tag = 'input window, operand 3, single buffered']
    #allocation6 [shape = 's32[1]{0}', space=sflag, size = 0x4, scoped, tag = 'scoped memory for tpu_custom_call.1']
    #allocation7 [shape = 'u8[8192]{0}', space=vmem, size = 0x2000, scoped, tag = 'output window, operand 0']
    %10 = vsyncpa [#allocation3], 0
    %11 = vsyncpa [#allocation6], 0
    %12 = vsyncpa [#allocation4], 0
    %s13 = scalar_lea.sflag [#allocation4], 1
    %14 = vsyncpa %s13, 0
    loop: start=0, step=1, limit=4
    $region2: #{tpu_custom_call.1} parent=1 // loop_pre_header
      _
    $region3: #{tpu_custom_call.1} parent=1 // loop_header
      %s16 = sphi 0, %s20
      %p17 = scmp.ge.s32.totalorder %s16, 4
      %s26 = sphi 0, %s28
      %s29 = sphi 0, %s26
      %s30 = sphi 0, %s29
      %s46 = sphi 0, %s30
      %s52 = sphi 0, %s54
      %s55 = sphi 0, %s52
      %s56 = sphi 0, %s55
      %s72 = sphi 0, %s56
      %s76 = sphi 0, %s76
      %s78 = sphi 0, %s76
      %s79 = sphi 0, %s78
      %s93 = sphi 0, %s79
      %s97 = sphi 0, %s97
      %s99 = sphi 0, %s97
      %s100 = sphi 0, %s99
      %s114 = sphi 0, %s100
      %s118 = sphi 0, %s118
      %s120 = sphi 0, %s118
      %s121 = sphi 0, %s120
      %s135 = sphi 0, %s121
      %s141 = sphi 0, %s143
      %s144 = sphi 0, %s141
      %s145 = sphi 0, %s144
      %s161 = sphi 0, %s145
    $region4: #{tpu_custom_call.1} parent=1 // loop_header_branch
      %19 = sbr.rel (%p17) target = $region8
    $region5: #{tpu_custom_call.1} parent=1 // loop_body
      %s21 = ssub.s32 %s16, 1
      %s22 = ssub.s32 %s16, 2
      %s23 = sadd.s32 %s16, 1
      %s24 = ssub.s32 %s16, %s23
      %p25 = scmp.eq.s32.totalorder %s24, 0
      %s27 = sadd.s32 %s26, 1
      %s28 = scalar_select %p25, %s26, %s27
      %p31 = pneg %p25
      %p32 = scmp.eq.s32.totalorder %s16, 1
      %p33 = por %p31, %p32
      %p34 = scmp.ne.s32.totalorder %s26, %s29
      %p35 = scmp.eq.s32.totalorder %s16, 0
      %p36 = por %p34, %p35
      %p37 = scmp.ne.s32.totalorder %s26, %s29
      %p38 = scmp.eq.s32.totalorder %s21, 1
      %p39 = por %p37, %p38
      %p40 = scmp.ne.s32.totalorder %s29, %s30
      %p41 = scmp.eq.s32.totalorder %s21, 0
      %p42 = por %p40, %p41
      %p43 = scmp.ne.s32.totalorder %s29, %s30
      %p44 = scmp.eq.s32.totalorder %s22, 1
      %p45 = por %p43, %p44
      %p47 = scmp.ne.s32.totalorder %s30, %s46
      %p48 = scmp.eq.s32.totalorder %s22, 0
      %p49 = por %p47, %p48
      %s50 = ssub.s32 %s16, %s23
      %p51 = scmp.eq.s32.totalorder %s50, 0
      %s53 = sadd.s32 %s52, 1
      %s54 = scalar_select %p51, %s52, %s53
      %p57 = pneg %p51
      %p58 = scmp.eq.s32.totalorder %s16, 1
      %p59 = por %p57, %p58
      %p60 = scmp.ne.s32.totalorder %s52, %s55
      %p61 = scmp.eq.s32.totalorder %s16, 0
      %p62 = por %p60, %p61
      %p63 = scmp.ne.s32.totalorder %s52, %s55
      %p64 = scmp.eq.s32.totalorder %s21, 1
      %p65 = por %p63, %p64
      %p66 = scmp.ne.s32.totalorder %s55, %s56
      %p67 = scmp.eq.s32.totalorder %s21, 0
      %p68 = por %p66, %p67
      %p69 = scmp.ne.s32.totalorder %s55, %s56
      %p70 = scmp.eq.s32.totalorder %s22, 1
      %p71 = por %p69, %p70
      %p73 = scmp.ne.s32.totalorder %s56, %s72
      %p74 = scmp.eq.s32.totalorder %s22, 0
      %p75 = por %p73, %p74
      %s77 = sadd.s32 %s76, 1
      %p80 = scmp.eq.s32.totalorder %s16, 1
      %p81 = scmp.ne.s32.totalorder %s76, %s78
      %p82 = scmp.eq.s32.totalorder %s16, 0
      %p83 = por %p81, %p82
      %p84 = scmp.ne.s32.totalorder %s76, %s78
      %p85 = scmp.eq.s32.totalorder %s21, 1
      %p86 = por %p84, %p85
      %p87 = scmp.ne.s32.totalorder %s78, %s79
      %p88 = scmp.eq.s32.totalorder %s21, 0
      %p89 = por %p87, %p88
      %p90 = scmp.ne.s32.totalorder %s78, %s79
      %p91 = scmp.eq.s32.totalorder %s22, 1
      %p92 = por %p90, %p91
      %p94 = scmp.ne.s32.totalorder %s79, %s93
      %p95 = scmp.eq.s32.totalorder %s22, 0
      %p96 = por %p94, %p95
      %s98 = sadd.s32 %s97, 1
      %p101 = scmp.eq.s32.totalorder %s16, 1
      %p102 = scmp.ne.s32.totalorder %s97, %s99
      %p103 = scmp.eq.s32.totalorder %s16, 0
      %p104 = por %p102, %p103
      %p105 = scmp.ne.s32.totalorder %s97, %s99
      %p106 = scmp.eq.s32.totalorder %s21, 1
      %p107 = por %p105, %p106
      %p108 = scmp.ne.s32.totalorder %s99, %s100
      %p109 = scmp.eq.s32.totalorder %s21, 0
      %p110 = por %p108, %p109
      %p111 = scmp.ne.s32.totalorder %s99, %s100
      %p112 = scmp.eq.s32.totalorder %s22, 1
      %p113 = por %p111, %p112
      %p115 = scmp.ne.s32.totalorder %s100, %s114
      %p116 = scmp.eq.s32.totalorder %s22, 0
      %p117 = por %p115, %p116
      %s119 = sadd.s32 %s118, 1
      %p122 = scmp.eq.s32.totalorder %s16, 1
      %p123 = scmp.ne.s32.totalorder %s118, %s120
      %p124 = scmp.eq.s32.totalorder %s16, 0
      %p125 = por %p123, %p124
      %p126 = scmp.ne.s32.totalorder %s118, %s120
      %p127 = scmp.eq.s32.totalorder %s21, 1
      %p128 = por %p126, %p127
      %p129 = scmp.ne.s32.totalorder %s120, %s121
      %p130 = scmp.eq.s32.totalorder %s21, 0
      %p131 = por %p129, %p130
      %p132 = scmp.ne.s32.totalorder %s120, %s121
      %p133 = scmp.eq.s32.totalorder %s22, 1
      %p134 = por %p132, %p133
      %p136 = scmp.ne.s32.totalorder %s121, %s135
      %p137 = scmp.eq.s32.totalorder %s22, 0
      %p138 = por %p136, %p137
      %s139 = ssub.s32 %s16, %s23
      %p140 = scmp.eq.s32.totalorder %s139, 0
      %s142 = sadd.s32 %s141, 1
      %s143 = scalar_select %p140, %s141, %s142
      %p146 = pneg %p140
      %p147 = scmp.eq.s32.totalorder %s16, 1
      %p148 = por %p146, %p147
      %p149 = scmp.ne.s32.totalorder %s141, %s144
      %p150 = scmp.eq.s32.totalorder %s16, 0
      %p151 = por %p149, %p150
      %p152 = scmp.ne.s32.totalorder %s141, %s144
      %p153 = scmp.eq.s32.totalorder %s21, 1
      %p154 = por %p152, %p153
      %p155 = scmp.ne.s32.totalorder %s144, %s145
      %p156 = scmp.eq.s32.totalorder %s21, 0
      %p157 = por %p155, %p156
      %p158 = scmp.ne.s32.totalorder %s144, %s145
      %p159 = scmp.eq.s32.totalorder %s22, 1
      %p160 = por %p158, %p159
      %p162 = scmp.ne.s32.totalorder %s145, %s161
      %p163 = scmp.eq.s32.totalorder %s22, 0
      %p164 = por %p162, %p163
      %p165 = scmp.le.s32.totalorder 1, %s16
      %p166 = scmp.lt.s32.totalorder %s16, 3
      %p167 = pnand %p165, %p166
      %p168 = pneg %p167
      // Predicated region
      $region9: #{tpu_custom_call.1} parent=5 // pred_check
        _
      $region10: #{tpu_custom_call.1} parent=5 // pred_check_branch
        %170 = sbr.rel (%p167) target = $region12
      $region11: #{tpu_custom_call.1} parent=5 // pred_region
        %s171 = ssub.s32 %s16, 1
        // Predicated region
        $region13: #{tpu_custom_call.1} parent=11 // pred_check
          %p172 = pneg %p89
        $region14: #{tpu_custom_call.1} parent=11 // pred_check_branch
          %174 = sbr.rel (%p172) target = $region16
        $region15: #{tpu_custom_call.1} parent=11 // pred_region
          %176 = vsyncadd [#allocation3], 0
          %s177 = sshll.u32 %s2, 4
          %s178 = int_to_ptr.hbm [resolvable:$true] %s177
          %s179 = sshll.u32 [#allocation2], 4
          %s180 = int_to_ptr.vmem [resolvable:$true] %s179
          %185 = dma.hbm_to_vmem [thread:$0]  %s178, 2048, %s180, [#allocation3], 512, 512, 32
        $region16: #{tpu_custom_call.1} parent=11 // pred_fallthru
          _
        // Predicated region
        $region17: #{tpu_custom_call.1} parent=11 // pred_check
          %p186 = pneg %p110
        $region18: #{tpu_custom_call.1} parent=11 // pred_check_branch
          %188 = sbr.rel (%p186) target = $region20
        $region19: #{tpu_custom_call.1} parent=11 // pred_region
          %190 = vsyncadd [#allocation6], 0
          %s191 = sshll.u32 %s3, 4
          %s192 = int_to_ptr.hbm [resolvable:$true] %s191
          %s193 = sshll.u32 [#allocation5], 4
          %s194 = int_to_ptr.vmem [resolvable:$true] %s193
          %199 = dma.hbm_to_vmem [thread:$0]  %s192, 8192, %s194, [#allocation6], 512, 512, 32
        $region20: #{tpu_custom_call.1} parent=11 // pred_fallthru
          _
        // Predicated region
        $region21: #{tpu_custom_call.1} parent=11 // pred_check
          %p200 = pneg %p131
        $region22: #{tpu_custom_call.1} parent=11 // pred_check_branch
          %202 = sbr.rel (%p200) target = $region24
        $region23: #{tpu_custom_call.1} parent=11 // pred_region
          _
        $region24: #{tpu_custom_call.1} parent=11 // pred_fallthru
          _
      $region12: #{tpu_custom_call.1} parent=5 // pred_fallthru
        _
      %p203 = scmp.lt.s32.totalorder %s16, 2
      // Predicated region
      $region25: #{tpu_custom_call.1} parent=5 // pred_check
        %p204 = pneg %p203
      $region26: #{tpu_custom_call.1} parent=5 // pred_check_branch
        %206 = sbr.rel (%p204) target = $region28
      $region27: #{tpu_custom_call.1} parent=5 // pred_region
        // Predicated region
        $region29: #{tpu_custom_call.1} parent=27 // pred_check
          %p207 = pneg %p36
        $region30: #{tpu_custom_call.1} parent=27 // pred_check_branch
          %209 = sbr.rel (%p207) target = $region32
        $region31: #{tpu_custom_call.1} parent=27 // pred_region
          %p210 = scmp.lt.s32.totalorder %s16, 1
          %s211 = scalar_select %p210, %s16, 1
          %s212 = smul.addr %s211, 8
          %s213 = smul.addr %s212, 8
          %s214 = scalar_lea.vmem %s0, %s213
        $region32: #{tpu_custom_call.1} parent=27 // pred_fallthru
          _
        // Predicated region
        $region33: #{tpu_custom_call.1} parent=27 // pred_check
          %p215 = pneg %p62
        $region34: #{tpu_custom_call.1} parent=27 // pred_check_branch
          %217 = sbr.rel (%p215) target = $region36
        $region35: #{tpu_custom_call.1} parent=27 // pred_region
          %p218 = scmp.lt.s32.totalorder %s16, 1
          %s219 = scalar_select %p218, %s16, 1
          %s220 = smul.addr %s219, 8
          %s221 = smul.addr %s220, 8
          %s222 = scalar_lea.vmem %s1, %s221
        $region36: #{tpu_custom_call.1} parent=27 // pred_fallthru
          _
      $region28: #{tpu_custom_call.1} parent=5 // pred_fallthru
        _
      %p223 = scmp.le.s32.totalorder 1, %s16
      %p224 = scmp.lt.s32.totalorder %s16, 3
      %p225 = pnand %p223, %p224
      %p226 = pneg %p225
      // Predicated region
      $region37: #{tpu_custom_call.1} parent=5 // pred_check
        _
      $region38: #{tpu_custom_call.1} parent=5 // pred_check_branch
        %228 = sbr.rel (%p225) target = $region40
      $region39: #{tpu_custom_call.1} parent=5 // pred_region
        %s229 = ssub.s32 %s16, 1
        // Predicated region
        $region41: #{tpu_custom_call.1} parent=39 // pred_check
          %p230 = pneg %p89
        $region42: #{tpu_custom_call.1} parent=39 // pred_check_branch
          %232 = sbr.rel (%p230) target = $region44
        $region43: #{tpu_custom_call.1} parent=39 // pred_region
          %234 = dma.done [#allocation3], 2048
        $region44: #{tpu_custom_call.1} parent=39 // pred_fallthru
          _
        // Predicated region
        $region45: #{tpu_custom_call.1} parent=39 // pred_check
          %p235 = pneg %p110
        $region46: #{tpu_custom_call.1} parent=39 // pred_check_branch
          %237 = sbr.rel (%p235) target = $region48
        $region47: #{tpu_custom_call.1} parent=39 // pred_region
          %239 = dma.done [#allocation6], 8192
        $region48: #{tpu_custom_call.1} parent=39 // pred_fallthru
          _
        %p240 = scmp.lt.s32.totalorder %s21, 1
        %s241 = scalar_select %p240, %s21, 1
        %s242 = smul.addr %s241, 8
        %s243 = smul.addr %s242, 8
        %s244 = scalar_lea.vmem %s0, %s243
        %p245 = pneg %p42
        %p246 = pneg %p39
        %p247 = scmp.lt.s32.totalorder %s21, 1
        %s248 = scalar_select %p247, %s21, 1
        %s249 = smul.addr %s248, 8
        %s250 = smul.addr %s249, 8
        %s251 = scalar_lea.vmem %s1, %s250
        %p252 = pneg %p68
        %p253 = pneg %p65
        %p254 = pneg %p89
        %p255 = pneg %p86
        %p256 = pneg %p110
        %p257 = pneg %p107
        %p258 = pneg %p131
        %p259 = pneg %p128
        %p260 = pneg %p157
        %p261 = pneg %p154
        %s262 = sand.u32 %s144, 1
        %s263 = scalar_lea.sflag [#allocation4], %s262
        %s264 = sand.u32 %s144, 1
        %s265 = smul.addr %s264, 8
        %s266 = scalar_lea.vmem [#allocation7], %s265
        %p267 = scmp.lt.s32.totalorder %s21, 1
        %s268 = scalar_select %p267, %s21, 1
        %s269 = smul.addr %s268, 8
        %s270 = smul.addr %s269, 8
        %s271 = scalar_lea.vmem %s0, %s270
        %p272 = scmp.lt.s32.totalorder %s21, 1
        %s273 = scalar_select %p272, %s21, 1
        %s274 = smul.addr %s273, 8
        %s275 = smul.addr %s274, 8
        %s276 = scalar_lea.vmem %s1, %s275
        %v277 = vld [vmem:[%s271] sm:$0xff]
        %v278 = vld [vmem:[%s271 + $0x8] sm:$0xff]
        %v279 = vld [vmem:[%s271 + $0x10] sm:$0xff]
        %v280 = vld [vmem:[%s271 + $0x18] sm:$0xff]
        %v281 = vld [vmem:[%s271 + $0x20] sm:$0xff]
        %v282 = vld [vmem:[%s271 + $0x28] sm:$0xff]
        %v283 = vld [vmem:[%s271 + $0x30] sm:$0xff]
        %v284 = vld [vmem:[%s271 + $0x38] sm:$0xff]
        %v285 = vld [vmem:[%s276] sm:$0xff]
        %v286 = vld [vmem:[%s276 + $0x8] sm:$0xff]
        %v287 = vld [vmem:[%s276 + $0x10] sm:$0xff]
        %v288 = vld [vmem:[%s276 + $0x18] sm:$0xff]
        %v289 = vld [vmem:[%s276 + $0x20] sm:$0xff]
        %v290 = vld [vmem:[%s276 + $0x28] sm:$0xff]
        %v291 = vld [vmem:[%s276 + $0x30] sm:$0xff]
        %v292 = vld [vmem:[%s276 + $0x38] sm:$0xff]
        %v293 = vlaneseq
        %v294 = vand.u32 %v293, 127
        %295 = vset.pattern.permute.xlu0 0
        %296 = vperm.xlu0 %295, %v277
        %v297 = vpop.permute.xlu0 %296
        %298 = vset.pattern.permute.xlu0 0
        %299 = vperm.xlu0 %298, %v278
        %v300 = vpop.permute.xlu0 %299
        %301 = vset.pattern.permute.xlu0 0
        %302 = vperm.xlu0 %301, %v279
        %v303 = vpop.permute.xlu0 %302
        %304 = vset.pattern.permute.xlu0 0
        %305 = vperm.xlu0 %304, %v280
        %v306 = vpop.permute.xlu0 %305
        %307 = vset.pattern.permute.xlu0 0
        %308 = vperm.xlu0 %307, %v281
        %v309 = vpop.permute.xlu0 %308
        %310 = vset.pattern.permute.xlu0 0
        %311 = vperm.xlu0 %310, %v282
        %v312 = vpop.permute.xlu0 %311
        %313 = vset.pattern.permute.xlu0 0
        %314 = vperm.xlu0 %313, %v283
        %v315 = vpop.permute.xlu0 %314
        %316 = vset.pattern.permute.xlu0 0
        %317 = vperm.xlu0 %316, %v284
        %v318 = vpop.permute.xlu0 %317
        %vm319 = vcmp.eq.s32.totalorder %v294, %v297
        %vm320 = vcmp.eq.s32.totalorder %v294, %v300
        %vm321 = vcmp.eq.s32.totalorder %v294, %v303
        %vm322 = vcmp.eq.s32.totalorder %v294, %v306
        %vm323 = vcmp.eq.s32.totalorder %v294, %v309
        %vm324 = vcmp.eq.s32.totalorder %v294, %v312
        %vm325 = vcmp.eq.s32.totalorder %v294, %v315
        %vm326 = vcmp.eq.s32.totalorder %v294, %v318
        %327 = vset.pattern.permute.xlu0 0
        %328 = vperm.xlu0 %327, %v285
        %v329 = vpop.permute.xlu0 %328
        %330 = vset.pattern.permute.xlu0 0
        %331 = vperm.xlu0 %330, %v286
        %v332 = vpop.permute.xlu0 %331
        %333 = vset.pattern.permute.xlu0 0
        %334 = vperm.xlu0 %333, %v287
        %v335 = vpop.permute.xlu0 %334
        %336 = vset.pattern.permute.xlu0 0
        %337 = vperm.xlu0 %336, %v288
        %v338 = vpop.permute.xlu0 %337
        %339 = vset.pattern.permute.xlu0 0
        %340 = vperm.xlu0 %339, %v289
        %v341 = vpop.permute.xlu0 %340
        %342 = vset.pattern.permute.xlu0 0
        %343 = vperm.xlu0 %342, %v290
        %v344 = vpop.permute.xlu0 %343
        %345 = vset.pattern.permute.xlu0 0
        %346 = vperm.xlu0 %345, %v291
        %v347 = vpop.permute.xlu0 %346
        %348 = vset.pattern.permute.xlu0 0
        %349 = vperm.xlu0 %348, %v292
        %v350 = vpop.permute.xlu0 %349
        %vm351 = vcmp.eq.s32.totalorder %v294, %v329
        %vm352 = vcmp.eq.s32.totalorder %v294, %v332
        %vm353 = vcmp.eq.s32.totalorder %v294, %v335
        %vm354 = vcmp.eq.s32.totalorder %v294, %v338
        %vm355 = vcmp.eq.s32.totalorder %v294, %v341
        %vm356 = vcmp.eq.s32.totalorder %v294, %v344
        %vm357 = vcmp.eq.s32.totalorder %v294, %v347
        %vm358 = vcmp.eq.s32.totalorder %v294, %v350
        %vm359 = vmor %vm319, %vm351
        %vm360 = vmor %vm320, %vm352
        %vm361 = vmor %vm321, %vm353
        %vm362 = vmor %vm322, %vm354
        %vm363 = vmor %vm323, %vm355
        %vm364 = vmor %vm324, %vm356
        %vm365 = vmor %vm325, %vm357
        %vm366 = vmor %vm326, %vm358
        %v367 = vsel %vm359, 1.0, 0.0
        %v368 = vsel %vm360, 1.0, 0.0
        %v369 = vsel %vm361, 1.0, 0.0
        %v370 = vsel %vm362, 1.0, 0.0
        %v371 = vsel %vm363, 1.0, 0.0
        %v372 = vsel %vm364, 1.0, 0.0
        %v373 = vsel %vm365, 1.0, 0.0
        %v374 = vsel %vm366, 1.0, 0.0
        %v375 = vld [vmem:[#allocation2] sm:$0xff]
        %v376 = vld [vmem:[#allocation2 + $0x8] sm:$0xff]
        %v377 = vld [vmem:[#allocation2 + $0x10] sm:$0xff]
        %v378 = vld [vmem:[#allocation2 + $0x18] sm:$0xff]
        %v379 = vld [vmem:[#allocation2 + $0x20] sm:$0xff]
        %v380 = vld [vmem:[#allocation2 + $0x28] sm:$0xff]
        %v381 = vld [vmem:[#allocation2 + $0x30] sm:$0xff]
        %v382 = vld [vmem:[#allocation2 + $0x38] sm:$0xff]
        %v383 = vld [vmem:[#allocation2 + $0x40] sm:$0xff]
        %v384 = vld [vmem:[#allocation2 + $0x48] sm:$0xff]
        %v385 = vld [vmem:[#allocation2 + $0x50] sm:$0xff]
        %v386 = vld [vmem:[#allocation2 + $0x58] sm:$0xff]
        %v387 = vld [vmem:[#allocation2 + $0x60] sm:$0xff]
        %v388 = vld [vmem:[#allocation2 + $0x68] sm:$0xff]
        %v389 = vld [vmem:[#allocation2 + $0x70] sm:$0xff]
        %v390 = vld [vmem:[#allocation2 + $0x78] sm:$0xff]
        %vm391 = vcmask 261120
        %v393 = vsel %vm391, %v367, 0
        %v396 = vsel %vm391, %v368, 0
        %v399 = vsel %vm391, %v369, 0
        %v402 = vsel %vm391, %v370, 0
        %v405 = vsel %vm391, %v371, 0
        %v408 = vsel %vm391, %v372, 0
        %v411 = vsel %vm391, %v373, 0
        %v414 = vsel %vm391, %v374, 0
        %416 = vmatpush.msra.mxu0 0.0
        %417 = vmatpush.msra.mxu0 0.0
        %418 = vmatpush.msra.mxu0 0.0
        %419 = vmatpush.msra.mxu0 0.0
        %420 = vmatpush.msra.mxu0 0.0
        %421 = vmatpush.msra.mxu0 0.0
        %422 = vmatpush.msra.mxu0 0.0
        %423 = vmatpush.msra.mxu0 0.0
        %424 = vmatpush.msra.mxu0 0.0
        %425 = vmatpush.msra.mxu0 0.0
        %426 = vmatpush.msra.mxu0 0.0
        %427 = vmatpush.msra.mxu0 0.0
        %428 = vmatpush.msra.mxu0 %v387
        %429 = vmatpush.msra.mxu0 %v383
        %430 = vmatpush.msra.mxu0 %v379
        %431 = vmatpush.msra.mxu0 %v375
        %432 = vmatmul.f32.gmra.mxu0 %v393
        %v433 = vpop.f32.mrf.mxu0
        %v434 = vadd.f32 0.0, %v433
        %435 = vmatmul.f32.gmra.mxu0 %v396
        %v436 = vpop.f32.mrf.mxu0
        %v437 = vadd.f32 0.0, %v436
        %438 = vmatmul.f32.gmra.mxu0 %v399
        %v439 = vpop.f32.mrf.mxu0
        %v440 = vadd.f32 0.0, %v439
        %441 = vmatmul.f32.gmra.mxu0 %v402
        %v442 = vpop.f32.mrf.mxu0
        %v443 = vadd.f32 0.0, %v442
        %444 = vmatmul.f32.gmra.mxu0 %v405
        %v445 = vpop.f32.mrf.mxu0
        %v446 = vadd.f32 0.0, %v445
        %447 = vmatmul.f32.gmra.mxu0 %v408
        %v448 = vpop.f32.mrf.mxu0
        %v449 = vadd.f32 0.0, %v448
        %450 = vmatmul.f32.gmra.mxu0 %v411
        %v451 = vpop.f32.mrf.mxu0
        %v452 = vadd.f32 0.0, %v451
        %453 = vmatmul.f32.gmra.mxu0 %v414
        %v454 = vpop.f32.mrf.mxu0
        %v455 = vadd.f32 0.0, %v454
        %456 = vdwg.mxu0
        %457 = vmatpush.msra.mxu0 0.0
        %458 = vmatpush.msra.mxu0 0.0
        %459 = vmatpush.msra.mxu0 0.0
        %460 = vmatpush.msra.mxu0 0.0
        %461 = vmatpush.msra.mxu0 0.0
        %462 = vmatpush.msra.mxu0 0.0
        %463 = vmatpush.msra.mxu0 0.0
        %464 = vmatpush.msra.mxu0 0.0
        %465 = vmatpush.msra.mxu0 0.0
        %466 = vmatpush.msra.mxu0 0.0
        %467 = vmatpush.msra.mxu0 0.0
        %468 = vmatpush.msra.mxu0 0.0
        %469 = vmatpush.msra.mxu0 %v388
        %470 = vmatpush.msra.mxu0 %v384
        %471 = vmatpush.msra.mxu0 %v380
        %472 = vmatpush.msra.mxu0 %v376
        %473 = vmatmul.f32.gmra.mxu0 %v393
        %v474 = vpop.f32.mrf.mxu0
        %475 = vmatmul.f32.gmra.mxu0 %v396
        %v476 = vpop.f32.mrf.mxu0
        %v477 = vadd.f32 0.0, %v476
        %478 = vmatmul.f32.gmra.mxu0 %v399
        %v479 = vpop.f32.mrf.mxu0
        %v480 = vadd.f32 0.0, %v479
        %481 = vmatmul.f32.gmra.mxu0 %v402
        %v482 = vpop.f32.mrf.mxu0
        %v483 = vadd.f32 0.0, %v482
        %484 = vmatmul.f32.gmra.mxu0 %v405
        %v485 = vpop.f32.mrf.mxu0
        %v486 = vadd.f32 0.0, %v485
        %487 = vmatmul.f32.gmra.mxu0 %v408
        %v488 = vpop.f32.mrf.mxu0
        %v489 = vadd.f32 0.0, %v488
        %490 = vmatmul.f32.gmra.mxu0 %v411
        %v491 = vpop.f32.mrf.mxu0
        %v492 = vadd.f32 0.0, %v491
        %493 = vmatmul.f32.gmra.mxu0 %v414
        %v494 = vpop.f32.mrf.mxu0
        %v495 = vadd.f32 0.0, %v494
        %496 = vdwg.mxu0
        %497 = vmatpush.msra.mxu0 0.0
        %498 = vmatpush.msra.mxu0 0.0
        %499 = vmatpush.msra.mxu0 0.0
        %500 = vmatpush.msra.mxu0 0.0
        %501 = vmatpush.msra.mxu0 0.0
        %502 = vmatpush.msra.mxu0 0.0
        %503 = vmatpush.msra.mxu0 0.0
        %504 = vmatpush.msra.mxu0 0.0
        %505 = vmatpush.msra.mxu0 0.0
        %506 = vmatpush.msra.mxu0 0.0
        %507 = vmatpush.msra.mxu0 0.0
        %508 = vmatpush.msra.mxu0 0.0
        %509 = vmatpush.msra.mxu0 %v389
        %510 = vmatpush.msra.mxu0 %v385
        %511 = vmatpush.msra.mxu0 %v381
        %512 = vmatpush.msra.mxu0 %v377
        %513 = vmatmul.f32.gmra.mxu0 %v393
        %v514 = vpop.f32.mrf.mxu0
        %v515 = vadd.f32 0.0, %v514
        %516 = vmatmul.f32.gmra.mxu0 %v396
        %v517 = vpop.f32.mrf.mxu0
        %v518 = vadd.f32 0.0, %v517
        %519 = vmatmul.f32.gmra.mxu0 %v399
        %v520 = vpop.f32.mrf.mxu0
        %v521 = vadd.f32 0.0, %v520
        %522 = vmatmul.f32.gmra.mxu0 %v402
        %v523 = vpop.f32.mrf.mxu0
        %v524 = vadd.f32 0.0, %v523
        %525 = vmatmul.f32.gmra.mxu0 %v405
        %v526 = vpop.f32.mrf.mxu0
        %v527 = vadd.f32 0.0, %v526
        %528 = vmatmul.f32.gmra.mxu0 %v408
        %v529 = vpop.f32.mrf.mxu0
        %v530 = vadd.f32 0.0, %v529
        %531 = vmatmul.f32.gmra.mxu0 %v411
        %v532 = vpop.f32.mrf.mxu0
        %v533 = vadd.f32 0.0, %v532
        %534 = vmatmul.f32.gmra.mxu0 %v414
        %v535 = vpop.f32.mrf.mxu0
        %v536 = vadd.f32 0.0, %v535
        %537 = vdwg.mxu0
        %538 = vmatpush.msra.mxu0 0.0
        %539 = vmatpush.msra.mxu0 0.0
        %540 = vmatpush.msra.mxu0 0.0
        %541 = vmatpush.msra.mxu0 0.0
        %542 = vmatpush.msra.mxu0 0.0
        %543 = vmatpush.msra.mxu0 0.0
        %544 = vmatpush.msra.mxu0 0.0
        %545 = vmatpush.msra.mxu0 0.0
        %546 = vmatpush.msra.mxu0 0.0
        %547 = vmatpush.msra.mxu0 0.0
        %548 = vmatpush.msra.mxu0 0.0
        %549 = vmatpush.msra.mxu0 0.0
        %550 = vmatpush.msra.mxu0 %v390
        %551 = vmatpush.msra.mxu0 %v386
        %552 = vmatpush.msra.mxu0 %v382
        %553 = vmatpush.msra.mxu0 %v378
        %554 = vmatmul.f32.gmra.mxu0 %v393
        %v555 = vpop.f32.mrf.mxu0
        %v556 = vadd.f32 0.0, %v555
        %557 = vmatmul.f32.gmra.mxu0 %v396
        %v558 = vpop.f32.mrf.mxu0
        %v559 = vadd.f32 0.0, %v558
        %560 = vmatmul.f32.gmra.mxu0 %v399
        %v561 = vpop.f32.mrf.mxu0
        %v562 = vadd.f32 0.0, %v561
        %563 = vmatmul.f32.gmra.mxu0 %v402
        %v564 = vpop.f32.mrf.mxu0
        %v565 = vadd.f32 0.0, %v564
        %566 = vmatmul.f32.gmra.mxu0 %v405
        %v567 = vpop.f32.mrf.mxu0
        %v568 = vadd.f32 0.0, %v567
        %569 = vmatmul.f32.gmra.mxu0 %v408
        %v570 = vpop.f32.mrf.mxu0
        %v571 = vadd.f32 0.0, %v570
        %572 = vmatmul.f32.gmra.mxu0 %v411
        %v573 = vpop.f32.mrf.mxu0
        %v574 = vadd.f32 0.0, %v573
        %575 = vmatmul.f32.gmra.mxu0 %v414
        %v576 = vpop.f32.mrf.mxu0
        %577 = vdwg.mxu0
        %v578 = vld [vmem:[#allocation5] sm:$0xff]
        %v579 = vld [vmem:[#allocation5 + $0x8] sm:$0xff]
        %v580 = vld [vmem:[#allocation5 + $0x10] sm:$0xff]
        %v581 = vld [vmem:[#allocation5 + $0x18] sm:$0xff]
        %v582 = vld [vmem:[#allocation5 + $0x20] sm:$0xff]
        %v583 = vld [vmem:[#allocation5 + $0x28] sm:$0xff]
        %v584 = vld [vmem:[#allocation5 + $0x30] sm:$0xff]
        %v585 = vld [vmem:[#allocation5 + $0x38] sm:$0xff]
        %v586 = vld [vmem:[#allocation5 + $0x40] sm:$0xff]
        %v587 = vld [vmem:[#allocation5 + $0x48] sm:$0xff]
        %v588 = vld [vmem:[#allocation5 + $0x50] sm:$0xff]
        %v589 = vld [vmem:[#allocation5 + $0x58] sm:$0xff]
        %v590 = vld [vmem:[#allocation5 + $0x60] sm:$0xff]
        %v591 = vld [vmem:[#allocation5 + $0x68] sm:$0xff]
        %v592 = vld [vmem:[#allocation5 + $0x70] sm:$0xff]
        %v593 = vld [vmem:[#allocation5 + $0x78] sm:$0xff]
        %v594 = vld [vmem:[#allocation5 + $0x80] sm:$0xff]
        %v595 = vld [vmem:[#allocation5 + $0x88] sm:$0xff]
        %v596 = vld [vmem:[#allocation5 + $0x90] sm:$0xff]
        %v597 = vld [vmem:[#allocation5 + $0x98] sm:$0xff]
        %v598 = vld [vmem:[#allocation5 + $0xa0] sm:$0xff]
        %v599 = vld [vmem:[#allocation5 + $0xa8] sm:$0xff]
        %v600 = vld [vmem:[#allocation5 + $0xb0] sm:$0xff]
        %v601 = vld [vmem:[#allocation5 + $0xb8] sm:$0xff]
        %v602 = vld [vmem:[#allocation5 + $0xc0] sm:$0xff]
        %v603 = vld [vmem:[#allocation5 + $0xc8] sm:$0xff]
        %v604 = vld [vmem:[#allocation5 + $0xd0] sm:$0xff]
        %v605 = vld [vmem:[#allocation5 + $0xd8] sm:$0xff]
        %v606 = vld [vmem:[#allocation5 + $0xe0] sm:$0xff]
        %v607 = vld [vmem:[#allocation5 + $0xe8] sm:$0xff]
        %v608 = vld [vmem:[#allocation5 + $0xf0] sm:$0xff]
        %v609 = vld [vmem:[#allocation5 + $0xf8] sm:$0xff]
        %v610 = vld [vmem:[#allocation5 + $0x100] sm:$0xff]
        %v611 = vld [vmem:[#allocation5 + $0x108] sm:$0xff]
        %v612 = vld [vmem:[#allocation5 + $0x110] sm:$0xff]
        %v613 = vld [vmem:[#allocation5 + $0x118] sm:$0xff]
        %v614 = vld [vmem:[#allocation5 + $0x120] sm:$0xff]
        %v615 = vld [vmem:[#allocation5 + $0x128] sm:$0xff]
        %v616 = vld [vmem:[#allocation5 + $0x130] sm:$0xff]
        %v617 = vld [vmem:[#allocation5 + $0x138] sm:$0xff]
        %v618 = vld [vmem:[#allocation5 + $0x140] sm:$0xff]
        %v619 = vld [vmem:[#allocation5 + $0x148] sm:$0xff]
        %v620 = vld [vmem:[#allocation5 + $0x150] sm:$0xff]
        %v621 = vld [vmem:[#allocation5 + $0x158] sm:$0xff]
        %v622 = vld [vmem:[#allocation5 + $0x160] sm:$0xff]
        %v623 = vld [vmem:[#allocation5 + $0x168] sm:$0xff]
        %v624 = vld [vmem:[#allocation5 + $0x170] sm:$0xff]
        %v625 = vld [vmem:[#allocation5 + $0x178] sm:$0xff]
        %v626 = vld [vmem:[#allocation5 + $0x180] sm:$0xff]
        %v627 = vld [vmem:[#allocation5 + $0x188] sm:$0xff]
        %v628 = vld [vmem:[#allocation5 + $0x190] sm:$0xff]
        %v629 = vld [vmem:[#allocation5 + $0x198] sm:$0xff]
        %v630 = vld [vmem:[#allocation5 + $0x1a0] sm:$0xff]
        %v631 = vld [vmem:[#allocation5 + $0x1a8] sm:$0xff]
        %v632 = vld [vmem:[#allocation5 + $0x1b0] sm:$0xff]
        %v633 = vld [vmem:[#allocation5 + $0x1b8] sm:$0xff]
        %v634 = vld [vmem:[#allocation5 + $0x1c0] sm:$0xff]
        %v635 = vld [vmem:[#allocation5 + $0x1c8] sm:$0xff]
        %v636 = vld [vmem:[#allocation5 + $0x1d0] sm:$0xff]
        %v637 = vld [vmem:[#allocation5 + $0x1d8] sm:$0xff]
        %v638 = vld [vmem:[#allocation5 + $0x1e0] sm:$0xff]
        %v639 = vld [vmem:[#allocation5 + $0x1e8] sm:$0xff]
        %v640 = vld [vmem:[#allocation5 + $0x1f0] sm:$0xff]
        %v641 = vld [vmem:[#allocation5 + $0x1f8] sm:$0xff]
        %v642 = vmul.f32 %v434, 0.5
        %v643 = vtanh.pop %v642
        %v644 = vmul.f32 %v643, 0.5
        %v645 = vadd.f32 %v644, 0.5
        %v646 = vtanh.pop %v515
        %v647 = vmul.f32 %v645, %v646
        %v648 = vmul.f32 %v556, 0.5
        %v649 = vtanh.pop %v648
        %v650 = vmul.f32 %v649, 0.5
        %v651 = vadd.f32 %v650, 0.5
        %v652 = vtanh.pop %v647
        %v653 = vmul.f32 %v651, %v652
        %654 = vmatpush.msra.mxu0 %v638
        %655 = vmatpush.msra.mxu0 %v634
        %656 = vmatpush.msra.mxu0 %v630
        %657 = vmatpush.msra.mxu0 %v626
        %658 = vmatpush.msra.mxu0 %v622
        %659 = vmatpush.msra.mxu0 %v618
        %660 = vmatpush.msra.mxu0 %v614
        %661 = vmatpush.msra.mxu0 %v610
        %662 = vmatpush.msra.mxu0 %v606
        %663 = vmatpush.msra.mxu0 %v602
        %664 = vmatpush.msra.mxu0 %v598
        %665 = vmatpush.msra.mxu0 %v594
        %666 = vmatpush.msra.mxu0 %v590
        %667 = vmatpush.msra.mxu0 %v586
        %668 = vmatpush.msra.mxu0 %v582
        %669 = vmatpush.msra.mxu0 %v578
        %670 = vmatmul.f32.gmra.mxu0 %v653
        %v671 = vpop.f32.mrf.mxu0
        %v672 = vadd.f32 0.0, %v671
        %673 = vdwg.mxu0
        %674 = vmatpush.msra.mxu0 %v639
        %675 = vmatpush.msra.mxu0 %v635
        %676 = vmatpush.msra.mxu0 %v631
        %677 = vmatpush.msra.mxu0 %v627
        %678 = vmatpush.msra.mxu0 %v623
        %679 = vmatpush.msra.mxu0 %v619
        %680 = vmatpush.msra.mxu0 %v615
        %681 = vmatpush.msra.mxu0 %v611
        %682 = vmatpush.msra.mxu0 %v607
        %683 = vmatpush.msra.mxu0 %v603
        %684 = vmatpush.msra.mxu0 %v599
        %685 = vmatpush.msra.mxu0 %v595
        %686 = vmatpush.msra.mxu0 %v591
        %687 = vmatpush.msra.mxu0 %v587
        %688 = vmatpush.msra.mxu0 %v583
        %689 = vmatpush.msra.mxu0 %v579
        %690 = vmatmul.f32.gmra.mxu0 %v653
        %v691 = vpop.f32.mrf.mxu0
        %v692 = vadd.f32 0.0, %v691
        %693 = vdwg.mxu0
        %694 = vmatpush.msra.mxu0 %v640
        %695 = vmatpush.msra.mxu0 %v636
        %696 = vmatpush.msra.mxu0 %v632
        %697 = vmatpush.msra.mxu0 %v628
        %698 = vmatpush.msra.mxu0 %v624
        %699 = vmatpush.msra.mxu0 %v620
        %700 = vmatpush.msra.mxu0 %v616
        %701 = vmatpush.msra.mxu0 %v612
        %702 = vmatpush.msra.mxu0 %v608
        %703 = vmatpush.msra.mxu0 %v604
        %704 = vmatpush.msra.mxu0 %v600
        %705 = vmatpush.msra.mxu0 %v596
        %706 = vmatpush.msra.mxu0 %v592
        %707 = vmatpush.msra.mxu0 %v588
        %708 = vmatpush.msra.mxu0 %v584
        %709 = vmatpush.msra.mxu0 %v580
        %710 = vmatmul.f32.gmra.mxu0 %v653
        %v711 = vpop.f32.mrf.mxu0
        %v712 = vadd.f32 0.0, %v711
        %713 = vdwg.mxu0
        %714 = vmatpush.msra.mxu0 %v641
        %715 = vmatpush.msra.mxu0 %v637
        %716 = vmatpush.msra.mxu0 %v633
        %717 = vmatpush.msra.mxu0 %v629
        %718 = vmatpush.msra.mxu0 %v625
        %719 = vmatpush.msra.mxu0 %v621
        %720 = vmatpush.msra.mxu0 %v617
        %721 = vmatpush.msra.mxu0 %v613
        %722 = vmatpush.msra.mxu0 %v609
        %723 = vmatpush.msra.mxu0 %v605
        %724 = vmatpush.msra.mxu0 %v601
        %725 = vmatpush.msra.mxu0 %v597
        %726 = vmatpush.msra.mxu0 %v593
        %727 = vmatpush.msra.mxu0 %v589
        %728 = vmatpush.msra.mxu0 %v585
        %729 = vmatpush.msra.mxu0 %v581
        %730 = vmatmul.f32.gmra.mxu0 %v653
        %v731 = vpop.f32.mrf.mxu0
        %v732 = vadd.f32 0.0, %v731
        %733 = vdwg.mxu0
        %v734 = vadd.f32 %v437, %v672
        %v735 = vadd.f32 %v477, %v692
        %v736 = vadd.f32 %v518, %v712
        %v737 = vadd.f32 %v559, %v732
        %v738 = vmul.f32 %v735, 0.5
        %v739 = vtanh.pop %v738
        %v740 = vmul.f32 %v739, 0.5
        %v741 = vadd.f32 %v740, 0.5
        %v742 = vmul.f32 %v741, %v647
        %v743 = vmul.f32 %v734, 0.5
        %v744 = vtanh.pop %v743
        %v745 = vmul.f32 %v744, 0.5
        %v746 = vadd.f32 %v745, 0.5
        %v747 = vtanh.pop %v736
        %v748 = vmul.f32 %v746, %v747
        %v749 = vadd.f32 %v742, %v748
        %v750 = vmul.f32 %v737, 0.5
        %v751 = vtanh.pop %v750
        %v752 = vmul.f32 %v751, 0.5
        %v753 = vadd.f32 %v752, 0.5
        %v754 = vtanh.pop %v749
        %v755 = vmul.f32 %v753, %v754
        %756 = vmatpush.msra.mxu0 %v638
        %757 = vmatpush.msra.mxu0 %v634
        %758 = vmatpush.msra.mxu0 %v630
        %759 = vmatpush.msra.mxu0 %v626
        %760 = vmatpush.msra.mxu0 %v622
        %761 = vmatpush.msra.mxu0 %v618
        %762 = vmatpush.msra.mxu0 %v614
        %763 = vmatpush.msra.mxu0 %v610
        %764 = vmatpush.msra.mxu0 %v606
        %765 = vmatpush.msra.mxu0 %v602
        %766 = vmatpush.msra.mxu0 %v598
        %767 = vmatpush.msra.mxu0 %v594
        %768 = vmatpush.msra.mxu0 %v590
        %769 = vmatpush.msra.mxu0 %v586
        %770 = vmatpush.msra.mxu0 %v582
        %771 = vmatpush.msra.mxu0 %v578
        %772 = vmatmul.f32.gmra.mxu0 %v755
        %v773 = vpop.f32.mrf.mxu0
        %v774 = vadd.f32 0.0, %v773
        %775 = vdwg.mxu0
        %776 = vmatpush.msra.mxu0 %v639
        %777 = vmatpush.msra.mxu0 %v635
        %778 = vmatpush.msra.mxu0 %v631
        %779 = vmatpush.msra.mxu0 %v627
        %780 = vmatpush.msra.mxu0 %v623
        %781 = vmatpush.msra.mxu0 %v619
        %782 = vmatpush.msra.mxu0 %v615
        %783 = vmatpush.msra.mxu0 %v611
        %784 = vmatpush.msra.mxu0 %v607
        %785 = vmatpush.msra.mxu0 %v603
        %786 = vmatpush.msra.mxu0 %v599
        %787 = vmatpush.msra.mxu0 %v595
        %788 = vmatpush.msra.mxu0 %v591
        %789 = vmatpush.msra.mxu0 %v587
        %790 = vmatpush.msra.mxu0 %v583
        %791 = vmatpush.msra.mxu0 %v579
        %792 = vmatmul.f32.gmra.mxu0 %v755
        %v793 = vpop.f32.mrf.mxu0
        %v794 = vadd.f32 0.0, %v793
        %795 = vdwg.mxu0
        %796 = vmatpush.msra.mxu0 %v640
        %797 = vmatpush.msra.mxu0 %v636
        %798 = vmatpush.msra.mxu0 %v632
        %799 = vmatpush.msra.mxu0 %v628
        %800 = vmatpush.msra.mxu0 %v624
        %801 = vmatpush.msra.mxu0 %v620
        %802 = vmatpush.msra.mxu0 %v616
        %803 = vmatpush.msra.mxu0 %v612
        %804 = vmatpush.msra.mxu0 %v608
        %805 = vmatpush.msra.mxu0 %v604
        %806 = vmatpush.msra.mxu0 %v600
        %807 = vmatpush.msra.mxu0 %v596
        %808 = vmatpush.msra.mxu0 %v592
        %809 = vmatpush.msra.mxu0 %v588
        %810 = vmatpush.msra.mxu0 %v584
        %811 = vmatpush.msra.mxu0 %v580
        %812 = vmatmul.f32.gmra.mxu0 %v755
        %v813 = vpop.f32.mrf.mxu0
        %v814 = vadd.f32 0.0, %v813
        %815 = vdwg.mxu0
        %816 = vmatpush.msra.mxu0 %v641
        %817 = vmatpush.msra.mxu0 %v637
        %818 = vmatpush.msra.mxu0 %v633
        %819 = vmatpush.msra.mxu0 %v629
        %820 = vmatpush.msra.mxu0 %v625
        %821 = vmatpush.msra.mxu0 %v621
        %822 = vmatpush.msra.mxu0 %v617
        %823 = vmatpush.msra.mxu0 %v613
        %824 = vmatpush.msra.mxu0 %v609
        %825 = vmatpush.msra.mxu0 %v605
        %826 = vmatpush.msra.mxu0 %v601
        %827 = vmatpush.msra.mxu0 %v597
        %828 = vmatpush.msra.mxu0 %v593
        %829 = vmatpush.msra.mxu0 %v589
        %830 = vmatpush.msra.mxu0 %v585
        %831 = vmatpush.msra.mxu0 %v581
        %832 = vmatmul.f32.gmra.mxu0 %v755
        %v833 = vpop.f32.mrf.mxu0
        %v834 = vadd.f32 0.0, %v833
        %835 = vdwg.mxu0
        %v836 = vadd.f32 %v440, %v774
        %v837 = vadd.f32 %v480, %v794
        %v838 = vadd.f32 %v521, %v814
        %v839 = vadd.f32 %v562, %v834
        %v840 = vmul.f32 %v837, 0.5
        %v841 = vtanh.pop %v840
        %v842 = vmul.f32 %v841, 0.5
        %v843 = vadd.f32 %v842, 0.5
        %v844 = vmul.f32 %v843, %v749
        %v845 = vmul.f32 %v836, 0.5
        %v846 = vtanh.pop %v845
        %v847 = vmul.f32 %v846, 0.5
        %v848 = vadd.f32 %v847, 0.5
        %v849 = vtanh.pop %v838
        %v850 = vmul.f32 %v848, %v849
        %v851 = vadd.f32 %v844, %v850
        %v852 = vmul.f32 %v839, 0.5
        %v853 = vtanh.pop %v852
        %v854 = vmul.f32 %v853, 0.5
        %v855 = vadd.f32 %v854, 0.5
        %v856 = vtanh.pop %v851
        %v857 = vmul.f32 %v855, %v856
        %858 = vmatpush.msra.mxu0 %v638
        %859 = vmatpush.msra.mxu0 %v634
        %860 = vmatpush.msra.mxu0 %v630
        %861 = vmatpush.msra.mxu0 %v626
        %862 = vmatpush.msra.mxu0 %v622
        %863 = vmatpush.msra.mxu0 %v618
        %864 = vmatpush.msra.mxu0 %v614
        %865 = vmatpush.msra.mxu0 %v610
        %866 = vmatpush.msra.mxu0 %v606
        %867 = vmatpush.msra.mxu0 %v602
        %868 = vmatpush.msra.mxu0 %v598
        %869 = vmatpush.msra.mxu0 %v594
        %870 = vmatpush.msra.mxu0 %v590
        %871 = vmatpush.msra.mxu0 %v586
        %872 = vmatpush.msra.mxu0 %v582
        %873 = vmatpush.msra.mxu0 %v578
        %874 = vmatmul.f32.gmra.mxu0 %v857
        %v875 = vpop.f32.mrf.mxu0
        %v876 = vadd.f32 0.0, %v875
        %877 = vdwg.mxu0
        %878 = vmatpush.msra.mxu0 %v639
        %879 = vmatpush.msra.mxu0 %v635
        %880 = vmatpush.msra.mxu0 %v631
        %881 = vmatpush.msra.mxu0 %v627
        %882 = vmatpush.msra.mxu0 %v623
        %883 = vmatpush.msra.mxu0 %v619
        %884 = vmatpush.msra.mxu0 %v615
        %885 = vmatpush.msra.mxu0 %v611
        %886 = vmatpush.msra.mxu0 %v607
        %887 = vmatpush.msra.mxu0 %v603
        %888 = vmatpush.msra.mxu0 %v599
        %889 = vmatpush.msra.mxu0 %v595
        %890 = vmatpush.msra.mxu0 %v591
        %891 = vmatpush.msra.mxu0 %v587
        %892 = vmatpush.msra.mxu0 %v583
        %893 = vmatpush.msra.mxu0 %v579
        %894 = vmatmul.f32.gmra.mxu0 %v857
        %v895 = vpop.f32.mrf.mxu0
        %v896 = vadd.f32 0.0, %v895
        %897 = vdwg.mxu0
        %898 = vmatpush.msra.mxu0 %v640
        %899 = vmatpush.msra.mxu0 %v636
        %900 = vmatpush.msra.mxu0 %v632
        %901 = vmatpush.msra.mxu0 %v628
        %902 = vmatpush.msra.mxu0 %v624
        %903 = vmatpush.msra.mxu0 %v620
        %904 = vmatpush.msra.mxu0 %v616
        %905 = vmatpush.msra.mxu0 %v612
        %906 = vmatpush.msra.mxu0 %v608
        %907 = vmatpush.msra.mxu0 %v604
        %908 = vmatpush.msra.mxu0 %v600
        %909 = vmatpush.msra.mxu0 %v596
        %910 = vmatpush.msra.mxu0 %v592
        %911 = vmatpush.msra.mxu0 %v588
        %912 = vmatpush.msra.mxu0 %v584
        %913 = vmatpush.msra.mxu0 %v580
        %914 = vmatmul.f32.gmra.mxu0 %v857
        %v915 = vpop.f32.mrf.mxu0
        %v916 = vadd.f32 0.0, %v915
        %917 = vdwg.mxu0
        %918 = vmatpush.msra.mxu0 %v641
        %919 = vmatpush.msra.mxu0 %v637
        %920 = vmatpush.msra.mxu0 %v633
        %921 = vmatpush.msra.mxu0 %v629
        %922 = vmatpush.msra.mxu0 %v625
        %923 = vmatpush.msra.mxu0 %v621
        %924 = vmatpush.msra.mxu0 %v617
        %925 = vmatpush.msra.mxu0 %v613
        %926 = vmatpush.msra.mxu0 %v609
        %927 = vmatpush.msra.mxu0 %v605
        %928 = vmatpush.msra.mxu0 %v601
        %929 = vmatpush.msra.mxu0 %v597
        %930 = vmatpush.msra.mxu0 %v593
        %931 = vmatpush.msra.mxu0 %v589
        %932 = vmatpush.msra.mxu0 %v585
        %933 = vmatpush.msra.mxu0 %v581
        %934 = vmatmul.f32.gmra.mxu0 %v857
        %v935 = vpop.f32.mrf.mxu0
        %v936 = vadd.f32 0.0, %v935
        %937 = vdwg.mxu0
        %v938 = vadd.f32 %v443, %v876
        %v939 = vadd.f32 %v483, %v896
        %v940 = vadd.f32 %v524, %v916
        %v941 = vadd.f32 %v565, %v936
        %v942 = vmul.f32 %v939, 0.5
        %v943 = vtanh.pop %v942
        %v944 = vmul.f32 %v943, 0.5
        %v945 = vadd.f32 %v944, 0.5
        %v946 = vmul.f32 %v945, %v851
        %v947 = vmul.f32 %v938, 0.5
        %v948 = vtanh.pop %v947
        %v949 = vmul.f32 %v948, 0.5
        %v950 = vadd.f32 %v949, 0.5
        %v951 = vtanh.pop %v940
        %v952 = vmul.f32 %v950, %v951
        %v953 = vadd.f32 %v946, %v952
        %v954 = vmul.f32 %v941, 0.5
        %v955 = vtanh.pop %v954
        %v956 = vmul.f32 %v955, 0.5
        %v957 = vadd.f32 %v956, 0.5
        %v958 = vtanh.pop %v953
        %v959 = vmul.f32 %v957, %v958
        %960 = vmatpush.msra.mxu0 %v638
        %961 = vmatpush.msra.mxu0 %v634
        %962 = vmatpush.msra.mxu0 %v630
        %963 = vmatpush.msra.mxu0 %v626
        %964 = vmatpush.msra.mxu0 %v622
        %965 = vmatpush.msra.mxu0 %v618
        %966 = vmatpush.msra.mxu0 %v614
        %967 = vmatpush.msra.mxu0 %v610
        %968 = vmatpush.msra.mxu0 %v606
        %969 = vmatpush.msra.mxu0 %v602
        %970 = vmatpush.msra.mxu0 %v598
        %971 = vmatpush.msra.mxu0 %v594
        %972 = vmatpush.msra.mxu0 %v590
        %973 = vmatpush.msra.mxu0 %v586
        %974 = vmatpush.msra.mxu0 %v582
        %975 = vmatpush.msra.mxu0 %v578
        %976 = vmatmul.f32.gmra.mxu0 %v959
        %v977 = vpop.f32.mrf.mxu0
        %v978 = vadd.f32 0.0, %v977
        %979 = vdwg.mxu0
        %980 = vmatpush.msra.mxu0 %v639
        %981 = vmatpush.msra.mxu0 %v635
        %982 = vmatpush.msra.mxu0 %v631
        %983 = vmatpush.msra.mxu0 %v627
        %984 = vmatpush.msra.mxu0 %v623
        %985 = vmatpush.msra.mxu0 %v619
        %986 = vmatpush.msra.mxu0 %v615
        %987 = vmatpush.msra.mxu0 %v611
        %988 = vmatpush.msra.mxu0 %v607
        %989 = vmatpush.msra.mxu0 %v603
        %990 = vmatpush.msra.mxu0 %v599
        %991 = vmatpush.msra.mxu0 %v595
        %992 = vmatpush.msra.mxu0 %v591
        %993 = vmatpush.msra.mxu0 %v587
        %994 = vmatpush.msra.mxu0 %v583
        %995 = vmatpush.msra.mxu0 %v579
        %996 = vmatmul.f32.gmra.mxu0 %v959
        %v997 = vpop.f32.mrf.mxu0
        %v998 = vadd.f32 0.0, %v997
        %999 = vdwg.mxu0
        %1000 = vmatpush.msra.mxu0 %v640
        %1001 = vmatpush.msra.mxu0 %v636
        %1002 = vmatpush.msra.mxu0 %v632
        %1003 = vmatpush.msra.mxu0 %v628
        %1004 = vmatpush.msra.mxu0 %v624
        %1005 = vmatpush.msra.mxu0 %v620
        %1006 = vmatpush.msra.mxu0 %v616
        %1007 = vmatpush.msra.mxu0 %v612
        %1008 = vmatpush.msra.mxu0 %v608
        %1009 = vmatpush.msra.mxu0 %v604
        %1010 = vmatpush.msra.mxu0 %v600
        %1011 = vmatpush.msra.mxu0 %v596
        %1012 = vmatpush.msra.mxu0 %v592
        %1013 = vmatpush.msra.mxu0 %v588
        %1014 = vmatpush.msra.mxu0 %v584
        %1015 = vmatpush.msra.mxu0 %v580
        %1016 = vmatmul.f32.gmra.mxu0 %v959
        %v1017 = vpop.f32.mrf.mxu0
        %v1018 = vadd.f32 0.0, %v1017
        %1019 = vdwg.mxu0
        %1020 = vmatpush.msra.mxu0 %v641
        %1021 = vmatpush.msra.mxu0 %v637
        %1022 = vmatpush.msra.mxu0 %v633
        %1023 = vmatpush.msra.mxu0 %v629
        %1024 = vmatpush.msra.mxu0 %v625
        %1025 = vmatpush.msra.mxu0 %v621
        %1026 = vmatpush.msra.mxu0 %v617
        %1027 = vmatpush.msra.mxu0 %v613
        %1028 = vmatpush.msra.mxu0 %v609
        %1029 = vmatpush.msra.mxu0 %v605
        %1030 = vmatpush.msra.mxu0 %v601
        %1031 = vmatpush.msra.mxu0 %v597
        %1032 = vmatpush.msra.mxu0 %v593
        %1033 = vmatpush.msra.mxu0 %v589
        %1034 = vmatpush.msra.mxu0 %v585
        %1035 = vmatpush.msra.mxu0 %v581
        %1036 = vmatmul.f32.gmra.mxu0 %v959
        %v1037 = vpop.f32.mrf.mxu0
        %v1038 = vadd.f32 0.0, %v1037
        %1039 = vdwg.mxu0
        %v1040 = vadd.f32 %v446, %v978
        %v1041 = vadd.f32 %v486, %v998
        %v1042 = vadd.f32 %v527, %v1018
        %v1043 = vadd.f32 %v568, %v1038
        %v1044 = vmul.f32 %v1041, 0.5
        %v1045 = vtanh.pop %v1044
        %v1046 = vmul.f32 %v1045, 0.5
        %v1047 = vadd.f32 %v1046, 0.5
        %v1048 = vmul.f32 %v1047, %v953
        %v1049 = vmul.f32 %v1040, 0.5
        %v1050 = vtanh.pop %v1049
        %v1051 = vmul.f32 %v1050, 0.5
        %v1052 = vadd.f32 %v1051, 0.5
        %v1053 = vtanh.pop %v1042
        %v1054 = vmul.f32 %v1052, %v1053
        %v1055 = vadd.f32 %v1048, %v1054
        %v1056 = vmul.f32 %v1043, 0.5
        %v1057 = vtanh.pop %v1056
        %v1058 = vmul.f32 %v1057, 0.5
        %v1059 = vadd.f32 %v1058, 0.5
        %v1060 = vtanh.pop %v1055
        %v1061 = vmul.f32 %v1059, %v1060
        %1062 = vmatpush.msra.mxu0 %v638
        %1063 = vmatpush.msra.mxu0 %v634
        %1064 = vmatpush.msra.mxu0 %v630
        %1065 = vmatpush.msra.mxu0 %v626
        %1066 = vmatpush.msra.mxu0 %v622
        %1067 = vmatpush.msra.mxu0 %v618
        %1068 = vmatpush.msra.mxu0 %v614
        %1069 = vmatpush.msra.mxu0 %v610
        %1070 = vmatpush.msra.mxu0 %v606
        %1071 = vmatpush.msra.mxu0 %v602
        %1072 = vmatpush.msra.mxu0 %v598
        %1073 = vmatpush.msra.mxu0 %v594
        %1074 = vmatpush.msra.mxu0 %v590
        %1075 = vmatpush.msra.mxu0 %v586
        %1076 = vmatpush.msra.mxu0 %v582
        %1077 = vmatpush.msra.mxu0 %v578
        %1078 = vmatmul.f32.gmra.mxu0 %v1061
        %v1079 = vpop.f32.mrf.mxu0
        %v1080 = vadd.f32 0.0, %v1079
        %1081 = vdwg.mxu0
        %1082 = vmatpush.msra.mxu0 %v639
        %1083 = vmatpush.msra.mxu0 %v635
        %1084 = vmatpush.msra.mxu0 %v631
        %1085 = vmatpush.msra.mxu0 %v627
        %1086 = vmatpush.msra.mxu0 %v623
        %1087 = vmatpush.msra.mxu0 %v619
        %1088 = vmatpush.msra.mxu0 %v615
        %1089 = vmatpush.msra.mxu0 %v611
        %1090 = vmatpush.msra.mxu0 %v607
        %1091 = vmatpush.msra.mxu0 %v603
        %1092 = vmatpush.msra.mxu0 %v599
        %1093 = vmatpush.msra.mxu0 %v595
        %1094 = vmatpush.msra.mxu0 %v591
        %1095 = vmatpush.msra.mxu0 %v587
        %1096 = vmatpush.msra.mxu0 %v583
        %1097 = vmatpush.msra.mxu0 %v579
        %1098 = vmatmul.f32.gmra.mxu0 %v1061
        %v1099 = vpop.f32.mrf.mxu0
        %v1100 = vadd.f32 0.0, %v1099
        %1101 = vdwg.mxu0
        %1102 = vmatpush.msra.mxu0 %v640
        %1103 = vmatpush.msra.mxu0 %v636
        %1104 = vmatpush.msra.mxu0 %v632
        %1105 = vmatpush.msra.mxu0 %v628
        %1106 = vmatpush.msra.mxu0 %v624
        %1107 = vmatpush.msra.mxu0 %v620
        %1108 = vmatpush.msra.mxu0 %v616
        %1109 = vmatpush.msra.mxu0 %v612
        %1110 = vmatpush.msra.mxu0 %v608
        %1111 = vmatpush.msra.mxu0 %v604
        %1112 = vmatpush.msra.mxu0 %v600
        %1113 = vmatpush.msra.mxu0 %v596
        %1114 = vmatpush.msra.mxu0 %v592
        %1115 = vmatpush.msra.mxu0 %v588
        %1116 = vmatpush.msra.mxu0 %v584
        %1117 = vmatpush.msra.mxu0 %v580
        %1118 = vmatmul.f32.gmra.mxu0 %v1061
        %v1119 = vpop.f32.mrf.mxu0
        %v1120 = vadd.f32 0.0, %v1119
        %1121 = vdwg.mxu0
        %1122 = vmatpush.msra.mxu0 %v641
        %1123 = vmatpush.msra.mxu0 %v637
        %1124 = vmatpush.msra.mxu0 %v633
        %1125 = vmatpush.msra.mxu0 %v629
        %1126 = vmatpush.msra.mxu0 %v625
        %1127 = vmatpush.msra.mxu0 %v621
        %1128 = vmatpush.msra.mxu0 %v617
        %1129 = vmatpush.msra.mxu0 %v613
        %1130 = vmatpush.msra.mxu0 %v609
        %1131 = vmatpush.msra.mxu0 %v605
        %1132 = vmatpush.msra.mxu0 %v601
        %1133 = vmatpush.msra.mxu0 %v597
        %1134 = vmatpush.msra.mxu0 %v593
        %1135 = vmatpush.msra.mxu0 %v589
        %1136 = vmatpush.msra.mxu0 %v585
        %1137 = vmatpush.msra.mxu0 %v581
        %1138 = vmatmul.f32.gmra.mxu0 %v1061
        %v1139 = vpop.f32.mrf.mxu0
        %v1140 = vadd.f32 0.0, %v1139
        %1141 = vdwg.mxu0
        %v1142 = vadd.f32 %v449, %v1080
        %v1143 = vadd.f32 %v489, %v1100
        %v1144 = vadd.f32 %v530, %v1120
        %v1145 = vadd.f32 %v571, %v1140
        %v1146 = vmul.f32 %v1143, 0.5
        %v1147 = vtanh.pop %v1146
        %v1148 = vmul.f32 %v1147, 0.5
        %v1149 = vadd.f32 %v1148, 0.5
        %v1150 = vmul.f32 %v1149, %v1055
        %v1151 = vmul.f32 %v1142, 0.5
        %v1152 = vtanh.pop %v1151
        %v1153 = vmul.f32 %v1152, 0.5
        %v1154 = vadd.f32 %v1153, 0.5
        %v1155 = vtanh.pop %v1144
        %v1156 = vmul.f32 %v1154, %v1155
        %v1157 = vadd.f32 %v1150, %v1156
        %v1158 = vmul.f32 %v1145, 0.5
        %v1159 = vtanh.pop %v1158
        %v1160 = vmul.f32 %v1159, 0.5
        %v1161 = vadd.f32 %v1160, 0.5
        %v1162 = vtanh.pop %v1157
        %v1163 = vmul.f32 %v1161, %v1162
        %1164 = vmatpush.msra.mxu0 %v638
        %1165 = vmatpush.msra.mxu0 %v634
        %1166 = vmatpush.msra.mxu0 %v630
        %1167 = vmatpush.msra.mxu0 %v626
        %1168 = vmatpush.msra.mxu0 %v622
        %1169 = vmatpush.msra.mxu0 %v618
        %1170 = vmatpush.msra.mxu0 %v614
        %1171 = vmatpush.msra.mxu0 %v610
        %1172 = vmatpush.msra.mxu0 %v606
        %1173 = vmatpush.msra.mxu0 %v602
        %1174 = vmatpush.msra.mxu0 %v598
        %1175 = vmatpush.msra.mxu0 %v594
        %1176 = vmatpush.msra.mxu0 %v590
        %1177 = vmatpush.msra.mxu0 %v586
        %1178 = vmatpush.msra.mxu0 %v582
        %1179 = vmatpush.msra.mxu0 %v578
        %1180 = vmatmul.f32.gmra.mxu0 %v1163
        %v1181 = vpop.f32.mrf.mxu0
        %v1182 = vadd.f32 0.0, %v1181
        %1183 = vdwg.mxu0
        %1184 = vmatpush.msra.mxu0 %v639
        %1185 = vmatpush.msra.mxu0 %v635
        %1186 = vmatpush.msra.mxu0 %v631
        %1187 = vmatpush.msra.mxu0 %v627
        %1188 = vmatpush.msra.mxu0 %v623
        %1189 = vmatpush.msra.mxu0 %v619
        %1190 = vmatpush.msra.mxu0 %v615
        %1191 = vmatpush.msra.mxu0 %v611
        %1192 = vmatpush.msra.mxu0 %v607
        %1193 = vmatpush.msra.mxu0 %v603
        %1194 = vmatpush.msra.mxu0 %v599
        %1195 = vmatpush.msra.mxu0 %v595
        %1196 = vmatpush.msra.mxu0 %v591
        %1197 = vmatpush.msra.mxu0 %v587
        %1198 = vmatpush.msra.mxu0 %v583
        %1199 = vmatpush.msra.mxu0 %v579
        %1200 = vmatmul.f32.gmra.mxu0 %v1163
        %v1201 = vpop.f32.mrf.mxu0
        %v1202 = vadd.f32 0.0, %v1201
        %1203 = vdwg.mxu0
        %1204 = vmatpush.msra.mxu0 %v640
        %1205 = vmatpush.msra.mxu0 %v636
        %1206 = vmatpush.msra.mxu0 %v632
        %1207 = vmatpush.msra.mxu0 %v628
        %1208 = vmatpush.msra.mxu0 %v624
        %1209 = vmatpush.msra.mxu0 %v620
        %1210 = vmatpush.msra.mxu0 %v616
        %1211 = vmatpush.msra.mxu0 %v612
        %1212 = vmatpush.msra.mxu0 %v608
        %1213 = vmatpush.msra.mxu0 %v604
        %1214 = vmatpush.msra.mxu0 %v600
        %1215 = vmatpush.msra.mxu0 %v596
        %1216 = vmatpush.msra.mxu0 %v592
        %1217 = vmatpush.msra.mxu0 %v588
        %1218 = vmatpush.msra.mxu0 %v584
        %1219 = vmatpush.msra.mxu0 %v580
        %1220 = vmatmul.f32.gmra.mxu0 %v1163
        %v1221 = vpop.f32.mrf.mxu0
        %v1222 = vadd.f32 0.0, %v1221
        %1223 = vdwg.mxu0
        %1224 = vmatpush.msra.mxu0 %v641
        %1225 = vmatpush.msra.mxu0 %v637
        %1226 = vmatpush.msra.mxu0 %v633
        %1227 = vmatpush.msra.mxu0 %v629
        %1228 = vmatpush.msra.mxu0 %v625
        %1229 = vmatpush.msra.mxu0 %v621
        %1230 = vmatpush.msra.mxu0 %v617
        %1231 = vmatpush.msra.mxu0 %v613
        %1232 = vmatpush.msra.mxu0 %v609
        %1233 = vmatpush.msra.mxu0 %v605
        %1234 = vmatpush.msra.mxu0 %v601
        %1235 = vmatpush.msra.mxu0 %v597
        %1236 = vmatpush.msra.mxu0 %v593
        %1237 = vmatpush.msra.mxu0 %v589
        %1238 = vmatpush.msra.mxu0 %v585
        %1239 = vmatpush.msra.mxu0 %v581
        %1240 = vmatmul.f32.gmra.mxu0 %v1163
        %v1241 = vpop.f32.mrf.mxu0
        %v1242 = vadd.f32 0.0, %v1241
        %1243 = vdwg.mxu0
        %v1244 = vadd.f32 %v452, %v1182
        %v1245 = vadd.f32 %v492, %v1202
        %v1246 = vadd.f32 %v533, %v1222
        %v1247 = vadd.f32 %v574, %v1242
        %v1248 = vmul.f32 %v1245, 0.5
        %v1249 = vtanh.pop %v1248
        %v1250 = vmul.f32 %v1249, 0.5
        %v1251 = vadd.f32 %v1250, 0.5
        %v1252 = vmul.f32 %v1251, %v1157
        %v1253 = vmul.f32 %v1244, 0.5
        %v1254 = vtanh.pop %v1253
        %v1255 = vmul.f32 %v1254, 0.5
        %v1256 = vadd.f32 %v1255, 0.5
        %v1257 = vtanh.pop %v1246
        %v1258 = vmul.f32 %v1256, %v1257
        %v1259 = vadd.f32 %v1252, %v1258
        %v1260 = vmul.f32 %v1247, 0.5
        %v1261 = vtanh.pop %v1260
        %v1262 = vmul.f32 %v1261, 0.5
        %v1263 = vadd.f32 %v1262, 0.5
        %v1264 = vtanh.pop %v1259
        %v1265 = vmul.f32 %v1263, %v1264
        %1266 = vmatpush.msra.mxu0 %v638
        %1267 = vmatpush.msra.mxu0 %v634
        %1268 = vmatpush.msra.mxu0 %v630
        %1269 = vmatpush.msra.mxu0 %v626
        %1270 = vmatpush.msra.mxu0 %v622
        %1271 = vmatpush.msra.mxu0 %v618
        %1272 = vmatpush.msra.mxu0 %v614
        %1273 = vmatpush.msra.mxu0 %v610
        %1274 = vmatpush.msra.mxu0 %v606
        %1275 = vmatpush.msra.mxu0 %v602
        %1276 = vmatpush.msra.mxu0 %v598
        %1277 = vmatpush.msra.mxu0 %v594
        %1278 = vmatpush.msra.mxu0 %v590
        %1279 = vmatpush.msra.mxu0 %v586
        %1280 = vmatpush.msra.mxu0 %v582
        %1281 = vmatpush.msra.mxu0 %v578
        %1282 = vmatmul.f32.gmra.mxu0 %v1265
        %v1283 = vpop.f32.mrf.mxu0
        %v1284 = vadd.f32 0.0, %v1283
        %1285 = vdwg.mxu0
        %1286 = vmatpush.msra.mxu0 %v639
        %1287 = vmatpush.msra.mxu0 %v635
        %1288 = vmatpush.msra.mxu0 %v631
        %1289 = vmatpush.msra.mxu0 %v627
        %1290 = vmatpush.msra.mxu0 %v623
        %1291 = vmatpush.msra.mxu0 %v619
        %1292 = vmatpush.msra.mxu0 %v615
        %1293 = vmatpush.msra.mxu0 %v611
        %1294 = vmatpush.msra.mxu0 %v607
        %1295 = vmatpush.msra.mxu0 %v603
        %1296 = vmatpush.msra.mxu0 %v599
        %1297 = vmatpush.msra.mxu0 %v595
        %1298 = vmatpush.msra.mxu0 %v591
        %1299 = vmatpush.msra.mxu0 %v587
        %1300 = vmatpush.msra.mxu0 %v583
        %1301 = vmatpush.msra.mxu0 %v579
        %1302 = vmatmul.f32.gmra.mxu0 %v1265
        %v1303 = vpop.f32.mrf.mxu0
        %v1304 = vadd.f32 0.0, %v1303
        %1305 = vdwg.mxu0
        %1306 = vmatpush.msra.mxu0 %v640
        %1307 = vmatpush.msra.mxu0 %v636
        %1308 = vmatpush.msra.mxu0 %v632
        %1309 = vmatpush.msra.mxu0 %v628
        %1310 = vmatpush.msra.mxu0 %v624
        %1311 = vmatpush.msra.mxu0 %v620
        %1312 = vmatpush.msra.mxu0 %v616
        %1313 = vmatpush.msra.mxu0 %v612
        %1314 = vmatpush.msra.mxu0 %v608
        %1315 = vmatpush.msra.mxu0 %v604
        %1316 = vmatpush.msra.mxu0 %v600
        %1317 = vmatpush.msra.mxu0 %v596
        %1318 = vmatpush.msra.mxu0 %v592
        %1319 = vmatpush.msra.mxu0 %v588
        %1320 = vmatpush.msra.mxu0 %v584
        %1321 = vmatpush.msra.mxu0 %v580
        %1322 = vmatmul.f32.gmra.mxu0 %v1265
        %v1323 = vpop.f32.mrf.mxu0
        %v1324 = vadd.f32 0.0, %v1323
        %1325 = vdwg.mxu0
        %v1326 = vadd.f32 %v455, %v1284
        %v1327 = vadd.f32 %v495, %v1304
        %v1328 = vadd.f32 %v536, %v1324
        %v1329 = vmul.f32 %v1327, 0.5
        %v1330 = vtanh.pop %v1329
        %v1331 = vmul.f32 %v1330, 0.5
        %v1332 = vadd.f32 %v1331, 0.5
        %v1333 = vmul.f32 %v1332, %v1259
        %v1334 = vmul.f32 %v1326, 0.5
        %v1335 = vtanh.pop %v1334
        %v1336 = vmul.f32 %v1335, 0.5
        %v1337 = vadd.f32 %v1336, 0.5
        %v1338 = vtanh.pop %v1328
        %v1339 = vmul.f32 %v1337, %v1338
        %v1340 = vadd.f32 %v1333, %v1339
        %v1341 = vld [vmem:[%s4] sm:$0xff]
        %v1342 = vld [vmem:[%s4 + $0x8] sm:$0xff]
        %v1343 = vld [vmem:[%s4 + $0x10] sm:$0xff]
        %v1344 = vld [vmem:[%s4 + $0x18] sm:$0xff]
        %v1345 = vld [vmem:[%s4 + $0x20] sm:$0xff]
        %v1346 = vld [vmem:[%s4 + $0x28] sm:$0xff]
        %v1347 = vld [vmem:[%s4 + $0x30] sm:$0xff]
        %v1348 = vld [vmem:[%s4 + $0x38] sm:$0xff]
        %v1349 = vld [vmem:[%s4 + $0x40] sm:$0xff]
        %v1350 = vld [vmem:[%s4 + $0x48] sm:$0xff]
        %v1351 = vld [vmem:[%s4 + $0x50] sm:$0xff]
        %v1352 = vld [vmem:[%s4 + $0x58] sm:$0xff]
        %v1353 = vld [vmem:[%s4 + $0x60] sm:$0xff]
        %v1354 = vld [vmem:[%s4 + $0x68] sm:$0xff]
        %v1355 = vld [vmem:[%s4 + $0x70] sm:$0xff]
        %v1356 = vld [vmem:[%s4 + $0x78] sm:$0xff]
        %v1357 = vld [vmem:[%s4 + $0x80] sm:$0x1]
        %v1358 = vperm.slane %v1357, 0
        %1359 = vmatpush.msra.mxu0 %v1356
        %1360 = vmatpush.msra.mxu0 %v1355
        %1361 = vmatpush.msra.mxu0 %v1354
        %1362 = vmatpush.msra.mxu0 %v1353
        %1363 = vmatpush.msra.mxu0 %v1352
        %1364 = vmatpush.msra.mxu0 %v1351
        %1365 = vmatpush.msra.mxu0 %v1350
        %1366 = vmatpush.msra.mxu0 %v1349
        %1367 = vmatpush.msra.mxu0 %v1348
        %1368 = vmatpush.msra.mxu0 %v1347
        %1369 = vmatpush.msra.mxu0 %v1346
        %1370 = vmatpush.msra.mxu0 %v1345
        %1371 = vmatpush.msra.mxu0 %v1344
        %1372 = vmatpush.msra.mxu0 %v1343
        %1373 = vmatpush.msra.mxu0 %v1342
        %1374 = vmatpush.msra.mxu0 %v1341
        %1375 = vmatmul.f32.gmra.mxu0 %v1340
        %v1376 = vpop.f32.mrf.mxu0
        %v1377 = vadd.f32 %v1358, %v1376
        %1378 = vdwg.mxu0
        %1379 = vst [vmem:[%s266] sm:$0xff] %v1377
        %s1380 = sand.u32 %s144, 1
        %s1381 = scalar_lea.sflag [#allocation4], %s1380
        %s1382 = sand.u32 %s144, 1
        %s1383 = smul.addr %s1382, 8
        %s1384 = scalar_lea.vmem [#allocation7], %s1383
        // Predicated region
        $region49: #{tpu_custom_call.1} parent=39 // pred_check
          %p1385 = pneg %p154
        $region50: #{tpu_custom_call.1} parent=39 // pred_check_branch
          %1387 = sbr.rel (%p1385) target = $region52
        $region51: #{tpu_custom_call.1} parent=39 // pred_region
          %1389 = vsyncadd %s1381, 0
          %s1390 = smul.addr %s21, 8
          %s1391 = scalar_lea.hbm %s5, %s1390
          %s1393 = sshll.u32 %s1384, 4
          %s1394 = int_to_ptr.vmem [resolvable:$true] %s1393
          %s1395 = sshll.u32 %s1391, 4
          %s1396 = int_to_ptr.hbm [resolvable:$true] %s1395
          %1398 = dma.vmem_to_hbm [thread:$0]  %s1394, 128, %s1396, %s1381
        $region52: #{tpu_custom_call.1} parent=39 // pred_fallthru
          _
      $region40: #{tpu_custom_call.1} parent=5 // pred_fallthru
        _
      %p1399 = scmp.le.s32.totalorder 2, %s16
      // Predicated region
      $region53: #{tpu_custom_call.1} parent=5 // pred_check
        %p1400 = pneg %p1399
      $region54: #{tpu_custom_call.1} parent=5 // pred_check_branch
        %1402 = sbr.rel (%p1400) target = $region56
      $region55: #{tpu_custom_call.1} parent=5 // pred_region
        %s1403 = ssub.s32 %s16, 2
        // Predicated region
        $region57: #{tpu_custom_call.1} parent=55 // pred_check
          %p1404 = pneg %p160
        $region58: #{tpu_custom_call.1} parent=55 // pred_check_branch
          %1406 = sbr.rel (%p1404) target = $region60
        $region59: #{tpu_custom_call.1} parent=55 // pred_region
          %s1407 = sand.u32 %s145, 1
          %s1408 = scalar_lea.sflag [#allocation4], %s1407
          %s1409 = sand.u32 %s145, 1
          %s1410 = smul.addr %s1409, 8
          %s1411 = scalar_lea.vmem [#allocation7], %s1410
          %1413 = dma.done %s1408, 128
        $region60: #{tpu_custom_call.1} parent=55 // pred_fallthru
          _
      $region56: #{tpu_custom_call.1} parent=5 // pred_fallthru
        _
    $region6: #{tpu_custom_call.1} parent=1 // loop_footer
      %s20 = sadd.s32 1, %s16
    $region7: #{tpu_custom_call.1} parent=1 // loop_footer_branch
      %15 = sbr.rel target = $region3
    $region8: #{tpu_custom_call.1} parent=1 // loop_exit
      _
    %1414 = vsyncpa [#allocation3], 1
    %s1415 = scalar_lea.sflag [#allocation3], 1
    %1416 = vsyncpa %s1415, 1
    %1417 = vsyncpa [#allocation6], 1
    %1418 = vsyncpa [#allocation4], 1
    %s1419 = scalar_lea.sflag [#allocation4], 1
    %1420 = vsyncpa %s1419, 1

</llo_original>
